<compile_context>
chip_gen: v7x
topology: tpu7x:2x2x1
jax: 0.10.0
libtpu: 0.0.40
codegen_flags: <defaults>
</compile_context>

<pallas_src>
import functools

import jax
import jax.numpy as jnp
import numpy as np
from jax.experimental import pallas as pl
from jax.experimental.pallas import tpu as pltpu


# ---------------------------------------------------------------------------
# In-kernel helpers
# ---------------------------------------------------------------------------

def _lstm_cell(gates, c_prev, H):
    """One LSTM cell update from pre-activation gates (PyTorch order i,f,g,o).

    gates: (B, 4H) f32.  Nonlinearities are evaluated full-width (one EUP pass
    over the whole 4H-lane tile) before the per-gate static lane slices.
    """
    sg = jax.nn.sigmoid(gates)
    th = jnp.tanh(gates)
    i_g = sg[:, 0 * H:1 * H]
    f_g = sg[:, 1 * H:2 * H]
    g_g = th[:, 2 * H:3 * H]
    o_g = sg[:, 3 * H:4 * H]
    c_new = f_g * c_prev + i_g * g_g
    h_new = o_g * jnp.tanh(c_new)
    return h_new, c_new


def _bilstm_recurrence(gx_scr, whh_f, whh_b, hf_ref, hb_ref, *, T, B, H):
    """Fused fwd+bwd recurrence over a precomputed gate-input scratch.

    gx_scr: (T*B, 8H) VMEM scratch, rows time-major; lanes [0,4H) hold the
            forward-direction input projection, [4H,8H) the backward one.
    hf_ref/hb_ref: optional (T*B, H) VMEM-resident hidden-sequence outputs.
    Returns the final (h_f, h_b) hidden states as register values.
    """
    G = 4 * H
    h_f = jnp.zeros((B, H), jnp.float32)
    c_f = jnp.zeros((B, H), jnp.float32)
    h_b = jnp.zeros((B, H), jnp.float32)
    c_b = jnp.zeros((B, H), jnp.float32)
    # Static unroll: T is small; keeps h/c in vregs and all slices static so
    # the only per-step MXU work on the serial chain is the tiny h @ W_hh.
    for t in range(T):
        rf = t * B                 # forward processes original time t
        rb = (T - 1 - t) * B       # backward processes original time T-1-t
        gates_f = gx_scr[rf:rf + B, 0:G] + jnp.dot(
            h_f, whh_f, preferred_element_type=jnp.float32)
        gates_b = gx_scr[rb:rb + B, G:2 * G] + jnp.dot(
            h_b, whh_b, preferred_element_type=jnp.float32)
        h_f, c_f = _lstm_cell(gates_f, c_f, H)
        h_b, c_b = _lstm_cell(gates_b, c_b, H)
        if hf_ref is not None:
            hf_ref[rf:rf + B, :] = h_f
            hb_ref[rb:rb + B, :] = h_b
    return h_f, h_b


# ---------------------------------------------------------------------------
# Pallas kernels (one pallas_call per LSTM layer; FC fused into the last one)
# ---------------------------------------------------------------------------

def _bilstm_first_kernel(x_ref, wih_ref, b_ref, whhf_ref, whhb_ref,
                         hf_ref, hb_ref, gx_scr, *, T, B, H):
    # Hoisted input projection: one (T*B, E) @ (E, 8H) matmul for both dirs.
    gx_scr[...] = (
        jnp.dot(x_ref[...], wih_ref[...], preferred_element_type=jnp.float32)
        + b_ref[...])
    _bilstm_recurrence(gx_scr, whhf_ref[...], whhb_ref[...],
                       hf_ref, hb_ref, T=T, B=B, H=H)


def _bilstm_mid_kernel(hfin_ref, hbin_ref, wtop_ref, wbot_ref, b_ref,
                       whhf_ref, whhb_ref, hf_ref, hb_ref, gx_scr,
                       *, T, B, H):
    # Input = concat(hf_prev, hb_prev) along features, done as a split matmul
    # so the previous layer never materializes an XLA concatenate.
    gx_scr[...] = (
        jnp.dot(hfin_ref[...], wtop_ref[...], preferred_element_type=jnp.float32)
        + jnp.dot(hbin_ref[...], wbot_ref[...], preferred_element_type=jnp.float32)
        + b_ref[...])
    _bilstm_recurrence(gx_scr, whhf_ref[...], whhb_ref[...],
                       hf_ref, hb_ref, T=T, B=B, H=H)


def _bilstm_last_kernel(hfin_ref, hbin_ref, wtop_ref, wbot_ref, b_ref,
                        whhf_ref, whhb_ref, wfcf_ref, wfcb_ref, bfc_ref,
                        logits_ref, gx_scr, *, T, B, H):
    gx_scr[...] = (
        jnp.dot(hfin_ref[...], wtop_ref[...], preferred_element_type=jnp.float32)
        + jnp.dot(hbin_ref[...], wbot_ref[...], preferred_element_type=jnp.float32)
        + b_ref[...])
    h_f, h_b = _bilstm_recurrence(gx_scr, whhf_ref[...], whhb_ref[...],
                                  None, None, T=T, B=B, H=H)
    # Fused classifier head: logits = [h_f | h_b] @ fc_w.T + fc_b.
    logits_ref[...] = (
        jnp.dot(h_f, wfcf_ref[...], preferred_element_type=jnp.float32)
        + jnp.dot(h_b, wfcb_ref[...], preferred_element_type=jnp.float32)
        + bfc_ref[...])


# ---------------------------------------------------------------------------
# pallas_call wrappers
# ---------------------------------------------------------------------------

def _vmem_spec():
    return pl.BlockSpec(memory_space=pltpu.MemorySpace.VMEM)


def _bilstm_first_layer(x2d, wih, bias, whhf, whhb, *, T, B, H):
    return pl.pallas_call(
        functools.partial(_bilstm_first_kernel, T=T, B=B, H=H),
        out_shape=(jax.ShapeDtypeStruct((T * B, H), jnp.float32),
                   jax.ShapeDtypeStruct((T * B, H), jnp.float32)),
        in_specs=[_vmem_spec() for _ in range(5)],
        out_specs=(_vmem_spec(), _vmem_spec()),
        scratch_shapes=[pltpu.VMEM((T * B, 8 * H), jnp.float32)],
    )(x2d, wih, bias, whhf, whhb)


def _bilstm_mid_layer(hf, hb, wtop, wbot, bias, whhf, whhb, *, T, B, H):
    return pl.pallas_call(
        functools.partial(_bilstm_mid_kernel, T=T, B=B, H=H),
        out_shape=(jax.ShapeDtypeStruct((T * B, H), jnp.float32),
                   jax.ShapeDtypeStruct((T * B, H), jnp.float32)),
        in_specs=[_vmem_spec() for _ in range(7)],
        out_specs=(_vmem_spec(), _vmem_spec()),
        scratch_shapes=[pltpu.VMEM((T * B, 8 * H), jnp.float32)],
    )(hf, hb, wtop, wbot, bias, whhf, whhb)


def _bilstm_last_layer(hf, hb, wtop, wbot, bias, whhf, whhb,
                       wfcf, wfcb, bfc, *, T, B, H, O):
    return pl.pallas_call(
        functools.partial(_bilstm_last_kernel, T=T, B=B, H=H),
        out_shape=jax.ShapeDtypeStruct((B, O), jnp.float32),
        in_specs=[_vmem_spec() for _ in range(10)],
        out_specs=_vmem_spec(),
        scratch_shapes=[pltpu.VMEM((T * B, 8 * H), jnp.float32)],
    )(hf, hb, wtop, wbot, bias, whhf, whhb, wfcf, wfcb, bfc)


# ---------------------------------------------------------------------------
# Forward pass
# ---------------------------------------------------------------------------

def bilstm_classifier_forward(params, text, text_lengths):
    """Pallas implementation of BiLSTM_Classifier.forward.

    text: (B, T) int32 token ids.  text_lengths is unused (the reference
    forward never packs).  Returns logits (B, output_dim) float32.
    """
    del text_lengths  # unused in the reference forward
    n_layers = params["n_layers"]
    assert n_layers >= 2, "module default is a 2-layer bidirectional stack"

    emb = params["embedding"]                       # (V, E)
    B, T = text.shape
    H = params["lstm"][0]["w_hh_f"].shape[1]
    O = params["fc_w"].shape[0]

    # Gather embeddings directly in time-major order -> (T, B, E) -> (T*B, E).
    # TODO(synk): could be fused into the first kernel via scalar-prefetched
    #             token ids + pl.Element row gather; left as one XLA gather.
    x2d = jnp.take(emb, jnp.transpose(text), axis=0).astype(jnp.float32)
    x2d = x2d.reshape(T * B, -1)

    def layer_weights(p):
        wtf = jnp.transpose(p["w_ih_f"])            # (Din, 4H)
        wtb = jnp.transpose(p["w_ih_b"])            # (Din, 4H)
        bias = jnp.concatenate(
            [p["b_ih_f"] + p["b_hh_f"],
             p["b_ih_b"] + p["b_hh_b"]]).reshape(1, -1)   # (1, 8H)
        whhf = jnp.transpose(p["w_hh_f"])           # (H, 4H)
        whhb = jnp.transpose(p["w_hh_b"])           # (H, 4H)
        return wtf, wtb, bias, whhf, whhb

    # ---- layer 0 ----
    wtf, wtb, bias, whhf, whhb = layer_weights(params["lstm"][0])
    wih = jnp.concatenate([wtf, wtb], axis=1)       # (E, 8H)
    hf, hb = _bilstm_first_layer(x2d, wih, bias, whhf, whhb, T=T, B=B, H=H)

    # ---- middle layers (only if n_layers > 2) ----
    for layer in range(1, n_layers - 1):
        wtf, wtb, bias, whhf, whhb = layer_weights(params["lstm"][layer])
        wtop = jnp.concatenate([wtf[:H], wtb[:H]], axis=1)   # (H, 8H)
        wbot = jnp.concatenate([wtf[H:], wtb[H:]], axis=1)   # (H, 8H)
        hf, hb = _bilstm_mid_layer(hf, hb, wtop, wbot, bias, whhf, whhb,
                                   T=T, B=B, H=H)

    # ---- last layer + fused FC head ----
    wtf, wtb, bias, whhf, whhb = layer_weights(params["lstm"][n_layers - 1])
    wtop = jnp.concatenate([wtf[:H], wtb[:H]], axis=1)       # (H, 8H)
    wbot = jnp.concatenate([wtf[H:], wtb[H:]], axis=1)       # (H, 8H)
    wfcf = jnp.transpose(params["fc_w"][:, :H])              # (H, O)
    wfcb = jnp.transpose(params["fc_w"][:, H:])              # (H, O)
    bfc = params["fc_b"].reshape(1, O)
    # num_linear == 1 -> no extra linear layers, straight to fc.
    logits = _bilstm_last_layer(hf, hb, wtop, wbot, bias, whhf, whhb,
                                wfcf, wfcb, bfc, T=T, B=B, H=H, O=O)
    return logits


# ---------------------------------------------------------------------------
# Pure-JAX reference (for self-check)
# ---------------------------------------------------------------------------

def _ref_lstm_dir(x_seq, w_ih, w_hh, b_ih, b_hh, reverse):
    T, B, _ = x_seq.shape
    H = w_hh.shape[1]
    xs = x_seq[::-1] if reverse else x_seq

    def step(carry, x_t):
        h, c = carry
        g = x_t @ w_ih.T + h @ w_hh.T + b_ih + b_hh
        i = jax.nn.sigmoid(g[:, :H])
        f = jax.nn.sigmoid(g[:, H:2 * H])
        gg = jnp.tanh(g[:, 2 * H:3 * H])
        o = jax.nn.sigmoid(g[:, 3 * H:])
        c = f * c + i * gg
        h = o * jnp.tanh(c)
        return (h, c), h

    init = (jnp.zeros((B, H)), jnp.zeros((B, H)))
    _, hs = jax.lax.scan(step, init, xs)
    return hs[::-1] if reverse else hs


def _ref_forward(params, text):
    emb = params["embedding"]
    x = jnp.take(emb, text, axis=0).transpose(1, 0, 2).astype(jnp.float32)
    layer_in = x
    for layer in range(params["n_layers"]):
        p = params["lstm"][layer]
        hf = _ref_lstm_dir(layer_in, p["w_ih_f"], p["w_hh_f"],
                           p["b_ih_f"], p["b_hh_f"], False)
        hb = _ref_lstm_dir(layer_in, p["w_ih_b"], p["w_hh_b"],
                           p["b_ih_b"], p["b_hh_b"], True)
        layer_in = jnp.concatenate([hf, hb], axis=-1)
        hff, hbf = hf[-1], hb[0]
    hidden = jnp.concatenate([hff, hbf], axis=-1)
    return hidden @ params["fc_w"].T + params["fc_b"]


# ---------------------------------------------------------------------------
# Parameter init (deterministic, mirrors the __init__ shapes)
# ---------------------------------------------------------------------------

def init_params(key, vocab_size, hidden_dim, output_dim,
                embedding_dim=100, n_layers=2):
    keys = jax.random.split(key, 2 + n_layers * 8 + 2)
    ki = iter(range(len(keys)))
    params = {"n_layers": n_layers}
    params["embedding"] = jax.random.normal(
        keys[next(ki)], (vocab_size, embedding_dim), jnp.float32)

    k0 = 1.0 / np.sqrt(hidden_dim)
    lstm = []
    for layer in range(n_layers):
        in_dim = embedding_dim if layer == 0 else 2 * hidden_dim

        def u(shape):
            return jax.random.uniform(keys[next(ki)], shape, jnp.float32,
                                      minval=-k0, maxval=k0)

        lstm.append({
            "w_ih_f": u((4 * hidden_dim, in_dim)),
            "w_hh_f": u((4 * hidden_dim, hidden_dim)),
            "b_ih_f": u((4 * hidden_dim,)),
            "b_hh_f": u((4 * hidden_dim,)),
            "w_ih_b": u((4 * hidden_dim, in_dim)),
            "w_hh_b": u((4 * hidden_dim, hidden_dim)),
            "b_ih_b": u((4 * hidden_dim,)),
            "b_hh_b": u((4 * hidden_dim,)),
        })
    params["lstm"] = lstm

    kf = 1.0 / np.sqrt(2 * hidden_dim)
    params["fc_w"] = jax.random.uniform(
        keys[next(ki)], (output_dim, 2 * hidden_dim), jnp.float32,
        minval=-kf, maxval=kf)
    params["fc_b"] = jax.random.uniform(
        keys[next(ki)], (output_dim,), jnp.float32, minval=-kf, maxval=kf)
    return params


# ---------------------------------------------------------------------------
# Main
# ---------------------------------------------------------------------------

if __name__ == "__main__":
    VOCAB, HIDDEN, OUTPUT, EMB = 50, 32, 4, 100
    B, T = 2, 8

    root = jax.random.PRNGKey(0)
    k_param, k_text = jax.random.split(root)
    params = init_params(k_param, VOCAB, HIDDEN, OUTPUT, embedding_dim=EMB)

    text = jax.random.randint(k_text, (B, T), 0, VOCAB, dtype=jnp.int32)
    text_lengths = jnp.full((B,), T, dtype=jnp.int32)

    logits = bilstm_classifier_forward(params, text, text_lengths)
    logits = jax.block_until_ready(logits)

    ref = jax.block_until_ready(_ref_forward(params, text))
    np.testing.assert_allclose(np.asarray(logits), np.asarray(ref),
                               rtol=1e-4, atol=1e-4)
    assert logits.shape == (B, OUTPUT)
    print("KERNEL_OK")
</pallas_src>

<mosaic_0001>
module attributes {stable_mosaic.version = 11 : i64} {
  func.func @_bilstm_first_kernel(%arg0: memref<16x100xf32, #tpu.memory_space<vmem>>, %arg1: memref<100x256xf32, #tpu.memory_space<vmem>>, %arg2: memref<1x256xf32, #tpu.memory_space<vmem>>, %arg3: memref<32x128xf32, #tpu.memory_space<vmem>>, %arg4: memref<32x128xf32, #tpu.memory_space<vmem>>, %arg5: memref<16x32xf32, #tpu.memory_space<vmem>>, %arg6: memref<16x32xf32, #tpu.memory_space<vmem>>, %arg7: memref<16x256xf32, #tpu.memory_space<vmem>>) attributes {dimension_semantics = [], scalar_prefetch = 0 : i64, scratch_operands = 1 : i64, tpu.core_type = #tpu.core_type<tc>} {
    %c0 = arith.constant 0 : index
    %c0_0 = arith.constant 0 : index
    %0 = vector.load %arg0[%c0, %c0_0] : memref<16x100xf32, #tpu.memory_space<vmem>>, vector<16x100xf32>
    %c0_1 = arith.constant 0 : index
    %c0_2 = arith.constant 0 : index
    %1 = vector.load %arg1[%c0_1, %c0_2] : memref<100x256xf32, #tpu.memory_space<vmem>>, vector<100x256xf32>
    %cst = arith.constant dense<0.000000e+00> : vector<16x256xf32>
    %2 = tpu.matmul %0, %1, %cst {dimension_numbers = #tpu.dot_dimension_numbers<[1], [0], [0], [1], [0, 0, 1, 1], [], []>} : vector<16x100xf32>, vector<100x256xf32>, vector<16x256xf32> -> vector<16x256xf32>
    %c0_3 = arith.constant 0 : index
    %c0_4 = arith.constant 0 : index
    %3 = vector.load %arg2[%c0_3, %c0_4] : memref<1x256xf32, #tpu.memory_space<vmem>>, vector<1x256xf32>
    %4 = vector.broadcast %3 : vector<1x256xf32> to vector<16x256xf32>
    %5 = arith.addf %2, %4 : vector<16x256xf32>
    %c0_5 = arith.constant 0 : index
    %c0_6 = arith.constant 0 : index
    %6 = vector.load %arg7[%c0_5, %c0_6] : memref<16x256xf32, #tpu.memory_space<vmem>>, vector<16x256xf32>
    tpu.vector_store %arg7[%c0_5, %c0_6], %5 {strides = array<i32>} : memref<16x256xf32, #tpu.memory_space<vmem>>, vector<16x256xf32>,
    %c0_7 = arith.constant 0 : index
    %c0_8 = arith.constant 0 : index
    %7 = vector.load %arg3[%c0_7, %c0_8] : memref<32x128xf32, #tpu.memory_space<vmem>>, vector<32x128xf32>
    %c0_9 = arith.constant 0 : index
    %c0_10 = arith.constant 0 : index
    %8 = vector.load %arg4[%c0_9, %c0_10] : memref<32x128xf32, #tpu.memory_space<vmem>>, vector<32x128xf32>
    %cst_11 = arith.constant 0.000000e+00 : f32
    %9 = vector.broadcast %cst_11 : f32 to vector<2x32xf32>
    %cst_12 = arith.constant 0.000000e+00 : f32
    %10 = vector.broadcast %cst_12 : f32 to vector<2x32xf32>
    %cst_13 = arith.constant 0.000000e+00 : f32
    %11 = vector.broadcast %cst_13 : f32 to vector<2x32xf32>
    %cst_14 = arith.constant 0.000000e+00 : f32
    %12 = vector.broadcast %cst_14 : f32 to vector<2x32xf32>
    %c0_15 = arith.constant 0 : index
    %c0_16 = arith.constant 0 : index
    %13 = vector.load %arg7[%c0_15, %c0_16] : memref<16x256xf32, #tpu.memory_space<vmem>>, vector<2x128xf32>
    %cst_17 = arith.constant dense<0.000000e+00> : vector<2x128xf32>
    %14 = tpu.matmul %9, %7, %cst_17 {dimension_numbers = #tpu.dot_dimension_numbers<[1], [0], [0], [1], [0, 0, 1, 1], [], []>} : vector<2x32xf32>, vector<32x128xf32>, vector<2x128xf32> -> vector<2x128xf32>
    %15 = arith.addf %13, %14 : vector<2x128xf32>
    %c14 = arith.constant 14 : index
    %c128 = arith.constant 128 : index
    %16 = vector.load %arg7[%c14, %c128] : memref<16x256xf32, #tpu.memory_space<vmem>>, vector<2x128xf32>
    %cst_18 = arith.constant dense<0.000000e+00> : vector<2x128xf32>
    %17 = tpu.matmul %11, %8, %cst_18 {dimension_numbers = #tpu.dot_dimension_numbers<[1], [0], [0], [1], [0, 0, 1, 1], [], []>} : vector<2x32xf32>, vector<32x128xf32>, vector<2x128xf32> -> vector<2x128xf32>
    %18 = arith.addf %16, %17 : vector<2x128xf32>
    %19 = arith.negf %15 : vector<2x128xf32>
    %20 = math.exp %19 : vector<2x128xf32>
    %cst_19 = arith.constant 1.000000e+00 : f32
    %21 = vector.broadcast %cst_19 : f32 to vector<2x128xf32>
    %22 = arith.addf %21, %20 : vector<2x128xf32>
    %23 = arith.divf %21, %22 : vector<2x128xf32>
    %24 = math.tanh %15 : vector<2x128xf32>
    %25 = vector.extract_strided_slice %23 {offsets = [0, 0], sizes = [2, 32], strides = [1, 1]} : vector<2x128xf32> to vector<2x32xf32>
    %26 = vector.extract_strided_slice %23 {offsets = [0, 32], sizes = [2, 32], strides = [1, 1]} : vector<2x128xf32> to vector<2x32xf32>
    %27 = vector.extract_strided_slice %24 {offsets = [0, 64], sizes = [2, 32], strides = [1, 1]} : vector<2x128xf32> to vector<2x32xf32>
    %28 = vector.extract_strided_slice %23 {offsets = [0, 96], sizes = [2, 32], strides = [1, 1]} : vector<2x128xf32> to vector<2x32xf32>
    %29 = arith.mulf %26, %10 : vector<2x32xf32>
    %30 = arith.mulf %25, %27 : vector<2x32xf32>
    %31 = arith.addf %29, %30 : vector<2x32xf32>
    %32 = math.tanh %31 : vector<2x32xf32>
    %33 = arith.mulf %28, %32 : vector<2x32xf32>
    %34 = arith.negf %18 : vector<2x128xf32>
    %35 = math.exp %34 : vector<2x128xf32>
    %cst_20 = arith.constant 1.000000e+00 : f32
    %36 = vector.broadcast %cst_20 : f32 to vector<2x128xf32>
    %37 = arith.addf %36, %35 : vector<2x128xf32>
    %38 = arith.divf %36, %37 : vector<2x128xf32>
    %39 = math.tanh %18 : vector<2x128xf32>
    %40 = vector.extract_strided_slice %38 {offsets = [0, 0], sizes = [2, 32], strides = [1, 1]} : vector<2x128xf32> to vector<2x32xf32>
    %41 = vector.extract_strided_slice %38 {offsets = [0, 32], sizes = [2, 32], strides = [1, 1]} : vector<2x128xf32> to vector<2x32xf32>
    %42 = vector.extract_strided_slice %39 {offsets = [0, 64], sizes = [2, 32], strides = [1, 1]} : vector<2x128xf32> to vector<2x32xf32>
    %43 = vector.extract_strided_slice %38 {offsets = [0, 96], sizes = [2, 32], strides = [1, 1]} : vector<2x128xf32> to vector<2x32xf32>
    %44 = arith.mulf %41, %12 : vector<2x32xf32>
    %45 = arith.mulf %40, %42 : vector<2x32xf32>
    %46 = arith.addf %44, %45 : vector<2x32xf32>
    %47 = math.tanh %46 : vector<2x32xf32>
    %48 = arith.mulf %43, %47 : vector<2x32xf32>
    %c0_21 = arith.constant 0 : index
    %c0_22 = arith.constant 0 : index
    %49 = vector.load %arg5[%c0_21, %c0_22] : memref<16x32xf32, #tpu.memory_space<vmem>>, vector<2x32xf32>
    tpu.vector_store %arg5[%c0_21, %c0_22], %33 {strides = array<i32>} : memref<16x32xf32, #tpu.memory_space<vmem>>, vector<2x32xf32>,
    %c14_23 = arith.constant 14 : index
    %c0_24 = arith.constant 0 : index
    %50 = vector.load %arg6[%c14_23, %c0_24] : memref<16x32xf32, #tpu.memory_space<vmem>>, vector<2x32xf32>
    tpu.vector_store %arg6[%c14_23, %c0_24], %48 {strides = array<i32>} : memref<16x32xf32, #tpu.memory_space<vmem>>, vector<2x32xf32>,
    %c2 = arith.constant 2 : index
    %c0_25 = arith.constant 0 : index
    %51 = vector.load %arg7[%c2, %c0_25] : memref<16x256xf32, #tpu.memory_space<vmem>>, vector<2x128xf32>
    %cst_26 = arith.constant dense<0.000000e+00> : vector<2x128xf32>
    %52 = tpu.matmul %33, %7, %cst_26 {dimension_numbers = #tpu.dot_dimension_numbers<[1], [0], [0], [1], [0, 0, 1, 1], [], []>} : vector<2x32xf32>, vector<32x128xf32>, vector<2x128xf32> -> vector<2x128xf32>
    %53 = arith.addf %51, %52 : vector<2x128xf32>
    %c12 = arith.constant 12 : index
    %c128_27 = arith.constant 128 : index
    %54 = vector.load %arg7[%c12, %c128_27] : memref<16x256xf32, #tpu.memory_space<vmem>>, vector<2x128xf32>
    %cst_28 = arith.constant dense<0.000000e+00> : vector<2x128xf32>
    %55 = tpu.matmul %48, %8, %cst_28 {dimension_numbers = #tpu.dot_dimension_numbers<[1], [0], [0], [1], [0, 0, 1, 1], [], []>} : vector<2x32xf32>, vector<32x128xf32>, vector<2x128xf32> -> vector<2x128xf32>
    %56 = arith.addf %54, %55 : vector<2x128xf32>
    %57 = arith.negf %53 : vector<2x128xf32>
    %58 = math.exp %57 : vector<2x128xf32>
    %cst_29 = arith.constant 1.000000e+00 : f32
    %59 = vector.broadcast %cst_29 : f32 to vector<2x128xf32>
    %60 = arith.addf %59, %58 : vector<2x128xf32>
    %61 = arith.divf %59, %60 : vector<2x128xf32>
    %62 = math.tanh %53 : vector<2x128xf32>
    %63 = vector.extract_strided_slice %61 {offsets = [0, 0], sizes = [2, 32], strides = [1, 1]} : vector<2x128xf32> to vector<2x32xf32>
    %64 = vector.extract_strided_slice %61 {offsets = [0, 32], sizes = [2, 32], strides = [1, 1]} : vector<2x128xf32> to vector<2x32xf32>
    %65 = vector.extract_strided_slice %62 {offsets = [0, 64], sizes = [2, 32], strides = [1, 1]} : vector<2x128xf32> to vector<2x32xf32>
    %66 = vector.extract_strided_slice %61 {offsets = [0, 96], sizes = [2, 32], strides = [1, 1]} : vector<2x128xf32> to vector<2x32xf32>
    %67 = arith.mulf %64, %31 : vector<2x32xf32>
    %68 = arith.mulf %63, %65 : vector<2x32xf32>
    %69 = arith.addf %67, %68 : vector<2x32xf32>
    %70 = math.tanh %69 : vector<2x32xf32>
    %71 = arith.mulf %66, %70 : vector<2x32xf32>
    %72 = arith.negf %56 : vector<2x128xf32>
    %73 = math.exp %72 : vector<2x128xf32>
    %cst_30 = arith.constant 1.000000e+00 : f32
    %74 = vector.broadcast %cst_30 : f32 to vector<2x128xf32>
    %75 = arith.addf %74, %73 : vector<2x128xf32>
    %76 = arith.divf %74, %75 : vector<2x128xf32>
    %77 = math.tanh %56 : vector<2x128xf32>
    %78 = vector.extract_strided_slice %76 {offsets = [0, 0], sizes = [2, 32], strides = [1, 1]} : vector<2x128xf32> to vector<2x32xf32>
    %79 = vector.extract_strided_slice %76 {offsets = [0, 32], sizes = [2, 32], strides = [1, 1]} : vector<2x128xf32> to vector<2x32xf32>
    %80 = vector.extract_strided_slice %77 {offsets = [0, 64], sizes = [2, 32], strides = [1, 1]} : vector<2x128xf32> to vector<2x32xf32>
    %81 = vector.extract_strided_slice %76 {offsets = [0, 96], sizes = [2, 32], strides = [1, 1]} : vector<2x128xf32> to vector<2x32xf32>
    %82 = arith.mulf %79, %46 : vector<2x32xf32>
    %83 = arith.mulf %78, %80 : vector<2x32xf32>
    %84 = arith.addf %82, %83 : vector<2x32xf32>
    %85 = math.tanh %84 : vector<2x32xf32>
    %86 = arith.mulf %81, %85 : vector<2x32xf32>
    %c2_31 = arith.constant 2 : index
    %c0_32 = arith.constant 0 : index
    %87 = vector.load %arg5[%c2_31, %c0_32] : memref<16x32xf32, #tpu.memory_space<vmem>>, vector<2x32xf32>
    tpu.vector_store %arg5[%c2_31, %c0_32], %71 {strides = array<i32>} : memref<16x32xf32, #tpu.memory_space<vmem>>, vector<2x32xf32>,
    %c12_33 = arith.constant 12 : index
    %c0_34 = arith.constant 0 : index
    %88 = vector.load %arg6[%c12_33, %c0_34] : memref<16x32xf32, #tpu.memory_space<vmem>>, vector<2x32xf32>
    tpu.vector_store %arg6[%c12_33, %c0_34], %86 {strides = array<i32>} : memref<16x32xf32, #tpu.memory_space<vmem>>, vector<2x32xf32>,
    %c4 = arith.constant 4 : index
    %c0_35 = arith.constant 0 : index
    %89 = vector.load %arg7[%c4, %c0_35] : memref<16x256xf32, #tpu.memory_space<vmem>>, vector<2x128xf32>
    %cst_36 = arith.constant dense<0.000000e+00> : vector<2x128xf32>
    %90 = tpu.matmul %71, %7, %cst_36 {dimension_numbers = #tpu.dot_dimension_numbers<[1], [0], [0], [1], [0, 0, 1, 1], [], []>} : vector<2x32xf32>, vector<32x128xf32>, vector<2x128xf32> -> vector<2x128xf32>
    %91 = arith.addf %89, %90 : vector<2x128xf32>
    %c10 = arith.constant 10 : index
    %c128_37 = arith.constant 128 : index
    %92 = vector.load %arg7[%c10, %c128_37] : memref<16x256xf32, #tpu.memory_space<vmem>>, vector<2x128xf32>
    %cst_38 = arith.constant dense<0.000000e+00> : vector<2x128xf32>
    %93 = tpu.matmul %86, %8, %cst_38 {dimension_numbers = #tpu.dot_dimension_numbers<[1], [0], [0], [1], [0, 0, 1, 1], [], []>} : vector<2x32xf32>, vector<32x128xf32>, vector<2x128xf32> -> vector<2x128xf32>
    %94 = arith.addf %92, %93 : vector<2x128xf32>
    %95 = arith.negf %91 : vector<2x128xf32>
    %96 = math.exp %95 : vector<2x128xf32>
    %cst_39 = arith.constant 1.000000e+00 : f32
    %97 = vector.broadcast %cst_39 : f32 to vector<2x128xf32>
    %98 = arith.addf %97, %96 : vector<2x128xf32>
    %99 = arith.divf %97, %98 : vector<2x128xf32>
    %100 = math.tanh %91 : vector<2x128xf32>
    %101 = vector.extract_strided_slice %99 {offsets = [0, 0], sizes = [2, 32], strides = [1, 1]} : vector<2x128xf32> to vector<2x32xf32>
    %102 = vector.extract_strided_slice %99 {offsets = [0, 32], sizes = [2, 32], strides = [1, 1]} : vector<2x128xf32> to vector<2x32xf32>
    %103 = vector.extract_strided_slice %100 {offsets = [0, 64], sizes = [2, 32], strides = [1, 1]} : vector<2x128xf32> to vector<2x32xf32>
    %104 = vector.extract_strided_slice %99 {offsets = [0, 96], sizes = [2, 32], strides = [1, 1]} : vector<2x128xf32> to vector<2x32xf32>
    %105 = arith.mulf %102, %69 : vector<2x32xf32>
    %106 = arith.mulf %101, %103 : vector<2x32xf32>
    %107 = arith.addf %105, %106 : vector<2x32xf32>
    %108 = math.tanh %107 : vector<2x32xf32>
    %109 = arith.mulf %104, %108 : vector<2x32xf32>
    %110 = arith.negf %94 : vector<2x128xf32>
    %111 = math.exp %110 : vector<2x128xf32>
    %cst_40 = arith.constant 1.000000e+00 : f32
    %112 = vector.broadcast %cst_40 : f32 to vector<2x128xf32>
    %113 = arith.addf %112, %111 : vector<2x128xf32>
    %114 = arith.divf %112, %113 : vector<2x128xf32>
    %115 = math.tanh %94 : vector<2x128xf32>
    %116 = vector.extract_strided_slice %114 {offsets = [0, 0], sizes = [2, 32], strides = [1, 1]} : vector<2x128xf32> to vector<2x32xf32>
    %117 = vector.extract_strided_slice %114 {offsets = [0, 32], sizes = [2, 32], strides = [1, 1]} : vector<2x128xf32> to vector<2x32xf32>
    %118 = vector.extract_strided_slice %115 {offsets = [0, 64], sizes = [2, 32], strides = [1, 1]} : vector<2x128xf32> to vector<2x32xf32>
    %119 = vector.extract_strided_slice %114 {offsets = [0, 96], sizes = [2, 32], strides = [1, 1]} : vector<2x128xf32> to vector<2x32xf32>
    %120 = arith.mulf %117, %84 : vector<2x32xf32>
    %121 = arith.mulf %116, %118 : vector<2x32xf32>
    %122 = arith.addf %120, %121 : vector<2x32xf32>
    %123 = math.tanh %122 : vector<2x32xf32>
    %124 = arith.mulf %119, %123 : vector<2x32xf32>
    %c4_41 = arith.constant 4 : index
    %c0_42 = arith.constant 0 : index
    %125 = vector.load %arg5[%c4_41, %c0_42] : memref<16x32xf32, #tpu.memory_space<vmem>>, vector<2x32xf32>
    tpu.vector_store %arg5[%c4_41, %c0_42], %109 {strides = array<i32>} : memref<16x32xf32, #tpu.memory_space<vmem>>, vector<2x32xf32>,
    %c10_43 = arith.constant 10 : index
    %c0_44 = arith.constant 0 : index
    %126 = vector.load %arg6[%c10_43, %c0_44] : memref<16x32xf32, #tpu.memory_space<vmem>>, vector<2x32xf32>
    tpu.vector_store %arg6[%c10_43, %c0_44], %124 {strides = array<i32>} : memref<16x32xf32, #tpu.memory_space<vmem>>, vector<2x32xf32>,
    %c6 = arith.constant 6 : index
    %c0_45 = arith.constant 0 : index
    %127 = vector.load %arg7[%c6, %c0_45] : memref<16x256xf32, #tpu.memory_space<vmem>>, vector<2x128xf32>
    %cst_46 = arith.constant dense<0.000000e+00> : vector<2x128xf32>
    %128 = tpu.matmul %109, %7, %cst_46 {dimension_numbers = #tpu.dot_dimension_numbers<[1], [0], [0], [1], [0, 0, 1, 1], [], []>} : vector<2x32xf32>, vector<32x128xf32>, vector<2x128xf32> -> vector<2x128xf32>
    %129 = arith.addf %127, %128 : vector<2x128xf32>
    %c8 = arith.constant 8 : index
    %c128_47 = arith.constant 128 : index
    %130 = vector.load %arg7[%c8, %c128_47] : memref<16x256xf32, #tpu.memory_space<vmem>>, vector<2x128xf32>
    %cst_48 = arith.constant dense<0.000000e+00> : vector<2x128xf32>
    %131 = tpu.matmul %124, %8, %cst_48 {dimension_numbers = #tpu.dot_dimension_numbers<[1], [0], [0], [1], [0, 0, 1, 1], [], []>} : vector<2x32xf32>, vector<32x128xf32>, vector<2x128xf32> -> vector<2x128xf32>
    %132 = arith.addf %130, %131 : vector<2x128xf32>
    %133 = arith.negf %129 : vector<2x128xf32>
    %134 = math.exp %133 : vector<2x128xf32>
    %cst_49 = arith.constant 1.000000e+00 : f32
    %135 = vector.broadcast %cst_49 : f32 to vector<2x128xf32>
    %136 = arith.addf %135, %134 : vector<2x128xf32>
    %137 = arith.divf %135, %136 : vector<2x128xf32>
    %138 = math.tanh %129 : vector<2x128xf32>
    %139 = vector.extract_strided_slice %137 {offsets = [0, 0], sizes = [2, 32], strides = [1, 1]} : vector<2x128xf32> to vector<2x32xf32>
    %140 = vector.extract_strided_slice %137 {offsets = [0, 32], sizes = [2, 32], strides = [1, 1]} : vector<2x128xf32> to vector<2x32xf32>
    %141 = vector.extract_strided_slice %138 {offsets = [0, 64], sizes = [2, 32], strides = [1, 1]} : vector<2x128xf32> to vector<2x32xf32>
    %142 = vector.extract_strided_slice %137 {offsets = [0, 96], sizes = [2, 32], strides = [1, 1]} : vector<2x128xf32> to vector<2x32xf32>
    %143 = arith.mulf %140, %107 : vector<2x32xf32>
    %144 = arith.mulf %139, %141 : vector<2x32xf32>
    %145 = arith.addf %143, %144 : vector<2x32xf32>
    %146 = math.tanh %145 : vector<2x32xf32>
    %147 = arith.mulf %142, %146 : vector<2x32xf32>
    %148 = arith.negf %132 : vector<2x128xf32>
    %149 = math.exp %148 : vector<2x128xf32>
    %cst_50 = arith.constant 1.000000e+00 : f32
    %150 = vector.broadcast %cst_50 : f32 to vector<2x128xf32>
    %151 = arith.addf %150, %149 : vector<2x128xf32>
    %152 = arith.divf %150, %151 : vector<2x128xf32>
    %153 = math.tanh %132 : vector<2x128xf32>
    %154 = vector.extract_strided_slice %152 {offsets = [0, 0], sizes = [2, 32], strides = [1, 1]} : vector<2x128xf32> to vector<2x32xf32>
    %155 = vector.extract_strided_slice %152 {offsets = [0, 32], sizes = [2, 32], strides = [1, 1]} : vector<2x128xf32> to vector<2x32xf32>
    %156 = vector.extract_strided_slice %153 {offsets = [0, 64], sizes = [2, 32], strides = [1, 1]} : vector<2x128xf32> to vector<2x32xf32>
    %157 = vector.extract_strided_slice %152 {offsets = [0, 96], sizes = [2, 32], strides = [1, 1]} : vector<2x128xf32> to vector<2x32xf32>
    %158 = arith.mulf %155, %122 : vector<2x32xf32>
    %159 = arith.mulf %154, %156 : vector<2x32xf32>
    %160 = arith.addf %158, %159 : vector<2x32xf32>
    %161 = math.tanh %160 : vector<2x32xf32>
    %162 = arith.mulf %157, %161 : vector<2x32xf32>
    %c6_51 = arith.constant 6 : index
    %c0_52 = arith.constant 0 : index
    %163 = vector.load %arg5[%c6_51, %c0_52] : memref<16x32xf32, #tpu.memory_space<vmem>>, vector<2x32xf32>
    tpu.vector_store %arg5[%c6_51, %c0_52], %147 {strides = array<i32>} : memref<16x32xf32, #tpu.memory_space<vmem>>, vector<2x32xf32>,
    %c8_53 = arith.constant 8 : index
    %c0_54 = arith.constant 0 : index
    %164 = vector.load %arg6[%c8_53, %c0_54] : memref<16x32xf32, #tpu.memory_space<vmem>>, vector<2x32xf32>
    tpu.vector_store %arg6[%c8_53, %c0_54], %162 {strides = array<i32>} : memref<16x32xf32, #tpu.memory_space<vmem>>, vector<2x32xf32>,
    %c8_55 = arith.constant 8 : index
    %c0_56 = arith.constant 0 : index
    %165 = vector.load %arg7[%c8_55, %c0_56] : memref<16x256xf32, #tpu.memory_space<vmem>>, vector<2x128xf32>
    %cst_57 = arith.constant dense<0.000000e+00> : vector<2x128xf32>
    %166 = tpu.matmul %147, %7, %cst_57 {dimension_numbers = #tpu.dot_dimension_numbers<[1], [0], [0], [1], [0, 0, 1, 1], [], []>} : vector<2x32xf32>, vector<32x128xf32>, vector<2x128xf32> -> vector<2x128xf32>
    %167 = arith.addf %165, %166 : vector<2x128xf32>
    %c6_58 = arith.constant 6 : index
    %c128_59 = arith.constant 128 : index
    %168 = vector.load %arg7[%c6_58, %c128_59] : memref<16x256xf32, #tpu.memory_space<vmem>>, vector<2x128xf32>
    %cst_60 = arith.constant dense<0.000000e+00> : vector<2x128xf32>
    %169 = tpu.matmul %162, %8, %cst_60 {dimension_numbers = #tpu.dot_dimension_numbers<[1], [0], [0], [1], [0, 0, 1, 1], [], []>} : vector<2x32xf32>, vector<32x128xf32>, vector<2x128xf32> -> vector<2x128xf32>
    %170 = arith.addf %168, %169 : vector<2x128xf32>
    %171 = arith.negf %167 : vector<2x128xf32>
    %172 = math.exp %171 : vector<2x128xf32>
    %cst_61 = arith.constant 1.000000e+00 : f32
    %173 = vector.broadcast %cst_61 : f32 to vector<2x128xf32>
    %174 = arith.addf %173, %172 : vector<2x128xf32>
    %175 = arith.divf %173, %174 : vector<2x128xf32>
    %176 = math.tanh %167 : vector<2x128xf32>
    %177 = vector.extract_strided_slice %175 {offsets = [0, 0], sizes = [2, 32], strides = [1, 1]} : vector<2x128xf32> to vector<2x32xf32>
    %178 = vector.extract_strided_slice %175 {offsets = [0, 32], sizes = [2, 32], strides = [1, 1]} : vector<2x128xf32> to vector<2x32xf32>
    %179 = vector.extract_strided_slice %176 {offsets = [0, 64], sizes = [2, 32], strides = [1, 1]} : vector<2x128xf32> to vector<2x32xf32>
    %180 = vector.extract_strided_slice %175 {offsets = [0, 96], sizes = [2, 32], strides = [1, 1]} : vector<2x128xf32> to vector<2x32xf32>
    %181 = arith.mulf %178, %145 : vector<2x32xf32>
    %182 = arith.mulf %177, %179 : vector<2x32xf32>
    %183 = arith.addf %181, %182 : vector<2x32xf32>
    %184 = math.tanh %183 : vector<2x32xf32>
    %185 = arith.mulf %180, %184 : vector<2x32xf32>
    %186 = arith.negf %170 : vector<2x128xf32>
    %187 = math.exp %186 : vector<2x128xf32>
    %cst_62 = arith.constant 1.000000e+00 : f32
    %188 = vector.broadcast %cst_62 : f32 to vector<2x128xf32>
    %189 = arith.addf %188, %187 : vector<2x128xf32>
    %190 = arith.divf %188, %189 : vector<2x128xf32>
    %191 = math.tanh %170 : vector<2x128xf32>
    %192 = vector.extract_strided_slice %190 {offsets = [0, 0], sizes = [2, 32], strides = [1, 1]} : vector<2x128xf32> to vector<2x32xf32>
    %193 = vector.extract_strided_slice %190 {offsets = [0, 32], sizes = [2, 32], strides = [1, 1]} : vector<2x128xf32> to vector<2x32xf32>
    %194 = vector.extract_strided_slice %191 {offsets = [0, 64], sizes = [2, 32], strides = [1, 1]} : vector<2x128xf32> to vector<2x32xf32>
    %195 = vector.extract_strided_slice %190 {offsets = [0, 96], sizes = [2, 32], strides = [1, 1]} : vector<2x128xf32> to vector<2x32xf32>
    %196 = arith.mulf %193, %160 : vector<2x32xf32>
    %197 = arith.mulf %192, %194 : vector<2x32xf32>
    %198 = arith.addf %196, %197 : vector<2x32xf32>
    %199 = math.tanh %198 : vector<2x32xf32>
    %200 = arith.mulf %195, %199 : vector<2x32xf32>
    %c8_63 = arith.constant 8 : index
    %c0_64 = arith.constant 0 : index
    %201 = vector.load %arg5[%c8_63, %c0_64] : memref<16x32xf32, #tpu.memory_space<vmem>>, vector<2x32xf32>
    tpu.vector_store %arg5[%c8_63, %c0_64], %185 {strides = array<i32>} : memref<16x32xf32, #tpu.memory_space<vmem>>, vector<2x32xf32>,
    %c6_65 = arith.constant 6 : index
    %c0_66 = arith.constant 0 : index
    %202 = vector.load %arg6[%c6_65, %c0_66] : memref<16x32xf32, #tpu.memory_space<vmem>>, vector<2x32xf32>
    tpu.vector_store %arg6[%c6_65, %c0_66], %200 {strides = array<i32>} : memref<16x32xf32, #tpu.memory_space<vmem>>, vector<2x32xf32>,
    %c10_67 = arith.constant 10 : index
    %c0_68 = arith.constant 0 : index
    %203 = vector.load %arg7[%c10_67, %c0_68] : memref<16x256xf32, #tpu.memory_space<vmem>>, vector<2x128xf32>
    %cst_69 = arith.constant dense<0.000000e+00> : vector<2x128xf32>
    %204 = tpu.matmul %185, %7, %cst_69 {dimension_numbers = #tpu.dot_dimension_numbers<[1], [0], [0], [1], [0, 0, 1, 1], [], []>} : vector<2x32xf32>, vector<32x128xf32>, vector<2x128xf32> -> vector<2x128xf32>
    %205 = arith.addf %203, %204 : vector<2x128xf32>
    %c4_70 = arith.constant 4 : index
    %c128_71 = arith.constant 128 : index
    %206 = vector.load %arg7[%c4_70, %c128_71] : memref<16x256xf32, #tpu.memory_space<vmem>>, vector<2x128xf32>
    %cst_72 = arith.constant dense<0.000000e+00> : vector<2x128xf32>
    %207 = tpu.matmul %200, %8, %cst_72 {dimension_numbers = #tpu.dot_dimension_numbers<[1], [0], [0], [1], [0, 0, 1, 1], [], []>} : vector<2x32xf32>, vector<32x128xf32>, vector<2x128xf32> -> vector<2x128xf32>
    %208 = arith.addf %206, %207 : vector<2x128xf32>
    %209 = arith.negf %205 : vector<2x128xf32>
    %210 = math.exp %209 : vector<2x128xf32>
    %cst_73 = arith.constant 1.000000e+00 : f32
    %211 = vector.broadcast %cst_73 : f32 to vector<2x128xf32>
    %212 = arith.addf %211, %210 : vector<2x128xf32>
    %213 = arith.divf %211, %212 : vector<2x128xf32>
    %214 = math.tanh %205 : vector<2x128xf32>
    %215 = vector.extract_strided_slice %213 {offsets = [0, 0], sizes = [2, 32], strides = [1, 1]} : vector<2x128xf32> to vector<2x32xf32>
    %216 = vector.extract_strided_slice %213 {offsets = [0, 32], sizes = [2, 32], strides = [1, 1]} : vector<2x128xf32> to vector<2x32xf32>
    %217 = vector.extract_strided_slice %214 {offsets = [0, 64], sizes = [2, 32], strides = [1, 1]} : vector<2x128xf32> to vector<2x32xf32>
    %218 = vector.extract_strided_slice %213 {offsets = [0, 96], sizes = [2, 32], strides = [1, 1]} : vector<2x128xf32> to vector<2x32xf32>
    %219 = arith.mulf %216, %183 : vector<2x32xf32>
    %220 = arith.mulf %215, %217 : vector<2x32xf32>
    %221 = arith.addf %219, %220 : vector<2x32xf32>
    %222 = math.tanh %221 : vector<2x32xf32>
    %223 = arith.mulf %218, %222 : vector<2x32xf32>
    %224 = arith.negf %208 : vector<2x128xf32>
    %225 = math.exp %224 : vector<2x128xf32>
    %cst_74 = arith.constant 1.000000e+00 : f32
    %226 = vector.broadcast %cst_74 : f32 to vector<2x128xf32>
    %227 = arith.addf %226, %225 : vector<2x128xf32>
    %228 = arith.divf %226, %227 : vector<2x128xf32>
    %229 = math.tanh %208 : vector<2x128xf32>
    %230 = vector.extract_strided_slice %228 {offsets = [0, 0], sizes = [2, 32], strides = [1, 1]} : vector<2x128xf32> to vector<2x32xf32>
    %231 = vector.extract_strided_slice %228 {offsets = [0, 32], sizes = [2, 32], strides = [1, 1]} : vector<2x128xf32> to vector<2x32xf32>
    %232 = vector.extract_strided_slice %229 {offsets = [0, 64], sizes = [2, 32], strides = [1, 1]} : vector<2x128xf32> to vector<2x32xf32>
    %233 = vector.extract_strided_slice %228 {offsets = [0, 96], sizes = [2, 32], strides = [1, 1]} : vector<2x128xf32> to vector<2x32xf32>
    %234 = arith.mulf %231, %198 : vector<2x32xf32>
    %235 = arith.mulf %230, %232 : vector<2x32xf32>
    %236 = arith.addf %234, %235 : vector<2x32xf32>
    %237 = math.tanh %236 : vector<2x32xf32>
    %238 = arith.mulf %233, %237 : vector<2x32xf32>
    %c10_75 = arith.constant 10 : index
    %c0_76 = arith.constant 0 : index
    %239 = vector.load %arg5[%c10_75, %c0_76] : memref<16x32xf32, #tpu.memory_space<vmem>>, vector<2x32xf32>
    tpu.vector_store %arg5[%c10_75, %c0_76], %223 {strides = array<i32>} : memref<16x32xf32, #tpu.memory_space<vmem>>, vector<2x32xf32>,
    %c4_77 = arith.constant 4 : index
    %c0_78 = arith.constant 0 : index
    %240 = vector.load %arg6[%c4_77, %c0_78] : memref<16x32xf32, #tpu.memory_space<vmem>>, vector<2x32xf32>
    tpu.vector_store %arg6[%c4_77, %c0_78], %238 {strides = array<i32>} : memref<16x32xf32, #tpu.memory_space<vmem>>, vector<2x32xf32>,
    %c12_79 = arith.constant 12 : index
    %c0_80 = arith.constant 0 : index
    %241 = vector.load %arg7[%c12_79, %c0_80] : memref<16x256xf32, #tpu.memory_space<vmem>>, vector<2x128xf32>
    %cst_81 = arith.constant dense<0.000000e+00> : vector<2x128xf32>
    %242 = tpu.matmul %223, %7, %cst_81 {dimension_numbers = #tpu.dot_dimension_numbers<[1], [0], [0], [1], [0, 0, 1, 1], [], []>} : vector<2x32xf32>, vector<32x128xf32>, vector<2x128xf32> -> vector<2x128xf32>
    %243 = arith.addf %241, %242 : vector<2x128xf32>
    %c2_82 = arith.constant 2 : index
    %c128_83 = arith.constant 128 : index
    %244 = vector.load %arg7[%c2_82, %c128_83] : memref<16x256xf32, #tpu.memory_space<vmem>>, vector<2x128xf32>
    %cst_84 = arith.constant dense<0.000000e+00> : vector<2x128xf32>
    %245 = tpu.matmul %238, %8, %cst_84 {dimension_numbers = #tpu.dot_dimension_numbers<[1], [0], [0], [1], [0, 0, 1, 1], [], []>} : vector<2x32xf32>, vector<32x128xf32>, vector<2x128xf32> -> vector<2x128xf32>
    %246 = arith.addf %244, %245 : vector<2x128xf32>
    %247 = arith.negf %243 : vector<2x128xf32>
    %248 = math.exp %247 : vector<2x128xf32>
    %cst_85 = arith.constant 1.000000e+00 : f32
    %249 = vector.broadcast %cst_85 : f32 to vector<2x128xf32>
    %250 = arith.addf %249, %248 : vector<2x128xf32>
    %251 = arith.divf %249, %250 : vector<2x128xf32>
    %252 = math.tanh %243 : vector<2x128xf32>
    %253 = vector.extract_strided_slice %251 {offsets = [0, 0], sizes = [2, 32], strides = [1, 1]} : vector<2x128xf32> to vector<2x32xf32>
    %254 = vector.extract_strided_slice %251 {offsets = [0, 32], sizes = [2, 32], strides = [1, 1]} : vector<2x128xf32> to vector<2x32xf32>
    %255 = vector.extract_strided_slice %252 {offsets = [0, 64], sizes = [2, 32], strides = [1, 1]} : vector<2x128xf32> to vector<2x32xf32>
    %256 = vector.extract_strided_slice %251 {offsets = [0, 96], sizes = [2, 32], strides = [1, 1]} : vector<2x128xf32> to vector<2x32xf32>
    %257 = arith.mulf %254, %221 : vector<2x32xf32>
    %258 = arith.mulf %253, %255 : vector<2x32xf32>
    %259 = arith.addf %257, %258 : vector<2x32xf32>
    %260 = math.tanh %259 : vector<2x32xf32>
    %261 = arith.mulf %256, %260 : vector<2x32xf32>
    %262 = arith.negf %246 : vector<2x128xf32>
    %263 = math.exp %262 : vector<2x128xf32>
    %cst_86 = arith.constant 1.000000e+00 : f32
    %264 = vector.broadcast %cst_86 : f32 to vector<2x128xf32>
    %265 = arith.addf %264, %263 : vector<2x128xf32>
    %266 = arith.divf %264, %265 : vector<2x128xf32>
    %267 = math.tanh %246 : vector<2x128xf32>
    %268 = vector.extract_strided_slice %266 {offsets = [0, 0], sizes = [2, 32], strides = [1, 1]} : vector<2x128xf32> to vector<2x32xf32>
    %269 = vector.extract_strided_slice %266 {offsets = [0, 32], sizes = [2, 32], strides = [1, 1]} : vector<2x128xf32> to vector<2x32xf32>
    %270 = vector.extract_strided_slice %267 {offsets = [0, 64], sizes = [2, 32], strides = [1, 1]} : vector<2x128xf32> to vector<2x32xf32>
    %271 = vector.extract_strided_slice %266 {offsets = [0, 96], sizes = [2, 32], strides = [1, 1]} : vector<2x128xf32> to vector<2x32xf32>
    %272 = arith.mulf %269, %236 : vector<2x32xf32>
    %273 = arith.mulf %268, %270 : vector<2x32xf32>
    %274 = arith.addf %272, %273 : vector<2x32xf32>
    %275 = math.tanh %274 : vector<2x32xf32>
    %276 = arith.mulf %271, %275 : vector<2x32xf32>
    %c12_87 = arith.constant 12 : index
    %c0_88 = arith.constant 0 : index
    %277 = vector.load %arg5[%c12_87, %c0_88] : memref<16x32xf32, #tpu.memory_space<vmem>>, vector<2x32xf32>
    tpu.vector_store %arg5[%c12_87, %c0_88], %261 {strides = array<i32>} : memref<16x32xf32, #tpu.memory_space<vmem>>, vector<2x32xf32>,
    %c2_89 = arith.constant 2 : index
    %c0_90 = arith.constant 0 : index
    %278 = vector.load %arg6[%c2_89, %c0_90] : memref<16x32xf32, #tpu.memory_space<vmem>>, vector<2x32xf32>
    tpu.vector_store %arg6[%c2_89, %c0_90], %276 {strides = array<i32>} : memref<16x32xf32, #tpu.memory_space<vmem>>, vector<2x32xf32>,
    %c14_91 = arith.constant 14 : index
    %c0_92 = arith.constant 0 : index
    %279 = vector.load %arg7[%c14_91, %c0_92] : memref<16x256xf32, #tpu.memory_space<vmem>>, vector<2x128xf32>
    %cst_93 = arith.constant dense<0.000000e+00> : vector<2x128xf32>
    %280 = tpu.matmul %261, %7, %cst_93 {dimension_numbers = #tpu.dot_dimension_numbers<[1], [0], [0], [1], [0, 0, 1, 1], [], []>} : vector<2x32xf32>, vector<32x128xf32>, vector<2x128xf32> -> vector<2x128xf32>
    %281 = arith.addf %279, %280 : vector<2x128xf32>
    %c0_94 = arith.constant 0 : index
    %c128_95 = arith.constant 128 : index
    %282 = vector.load %arg7[%c0_94, %c128_95] : memref<16x256xf32, #tpu.memory_space<vmem>>, vector<2x128xf32>
    %cst_96 = arith.constant dense<0.000000e+00> : vector<2x128xf32>
    %283 = tpu.matmul %276, %8, %cst_96 {dimension_numbers = #tpu.dot_dimension_numbers<[1], [0], [0], [1], [0, 0, 1, 1], [], []>} : vector<2x32xf32>, vector<32x128xf32>, vector<2x128xf32> -> vector<2x128xf32>
    %284 = arith.addf %282, %283 : vector<2x128xf32>
    %285 = arith.negf %281 : vector<2x128xf32>
    %286 = math.exp %285 : vector<2x128xf32>
    %cst_97 = arith.constant 1.000000e+00 : f32
    %287 = vector.broadcast %cst_97 : f32 to vector<2x128xf32>
    %288 = arith.addf %287, %286 : vector<2x128xf32>
    %289 = arith.divf %287, %288 : vector<2x128xf32>
    %290 = math.tanh %281 : vector<2x128xf32>
    %291 = vector.extract_strided_slice %289 {offsets = [0, 0], sizes = [2, 32], strides = [1, 1]} : vector<2x128xf32> to vector<2x32xf32>
    %292 = vector.extract_strided_slice %289 {offsets = [0, 32], sizes = [2, 32], strides = [1, 1]} : vector<2x128xf32> to vector<2x32xf32>
    %293 = vector.extract_strided_slice %290 {offsets = [0, 64], sizes = [2, 32], strides = [1, 1]} : vector<2x128xf32> to vector<2x32xf32>
    %294 = vector.extract_strided_slice %289 {offsets = [0, 96], sizes = [2, 32], strides = [1, 1]} : vector<2x128xf32> to vector<2x32xf32>
    %295 = arith.mulf %292, %259 : vector<2x32xf32>
    %296 = arith.mulf %291, %293 : vector<2x32xf32>
    %297 = arith.addf %295, %296 : vector<2x32xf32>
    %298 = math.tanh %297 : vector<2x32xf32>
    %299 = arith.mulf %294, %298 : vector<2x32xf32>
    %300 = arith.negf %284 : vector<2x128xf32>
    %301 = math.exp %300 : vector<2x128xf32>
    %cst_98 = arith.constant 1.000000e+00 : f32
    %302 = vector.broadcast %cst_98 : f32 to vector<2x128xf32>
    %303 = arith.addf %302, %301 : vector<2x128xf32>
    %304 = arith.divf %302, %303 : vector<2x128xf32>
    %305 = math.tanh %284 : vector<2x128xf32>
    %306 = vector.extract_strided_slice %304 {offsets = [0, 0], sizes = [2, 32], strides = [1, 1]} : vector<2x128xf32> to vector<2x32xf32>
    %307 = vector.extract_strided_slice %304 {offsets = [0, 32], sizes = [2, 32], strides = [1, 1]} : vector<2x128xf32> to vector<2x32xf32>
    %308 = vector.extract_strided_slice %305 {offsets = [0, 64], sizes = [2, 32], strides = [1, 1]} : vector<2x128xf32> to vector<2x32xf32>
    %309 = vector.extract_strided_slice %304 {offsets = [0, 96], sizes = [2, 32], strides = [1, 1]} : vector<2x128xf32> to vector<2x32xf32>
    %310 = arith.mulf %307, %274 : vector<2x32xf32>
    %311 = arith.mulf %306, %308 : vector<2x32xf32>
    %312 = arith.addf %310, %311 : vector<2x32xf32>
    %313 = math.tanh %312 : vector<2x32xf32>
    %314 = arith.mulf %309, %313 : vector<2x32xf32>
    %c14_99 = arith.constant 14 : index
    %c0_100 = arith.constant 0 : index
    %315 = vector.load %arg5[%c14_99, %c0_100] : memref<16x32xf32, #tpu.memory_space<vmem>>, vector<2x32xf32>
    tpu.vector_store %arg5[%c14_99, %c0_100], %299 {strides = array<i32>} : memref<16x32xf32, #tpu.memory_space<vmem>>, vector<2x32xf32>,
    %c0_101 = arith.constant 0 : index
    %c0_102 = arith.constant 0 : index
    %316 = vector.load %arg6[%c0_101, %c0_102] : memref<16x32xf32, #tpu.memory_space<vmem>>, vector<2x32xf32>
    tpu.vector_store %arg6[%c0_101, %c0_102], %314 {strides = array<i32>} : memref<16x32xf32, #tpu.memory_space<vmem>>, vector<2x32xf32>,
    return
  }
}

</mosaic_0001>

<llo_original>
// kernel: tpu_custom_call.1
$region0: #{tpu_custom_call.1}
  #allocation0 [shape = 'u32[]', space=smem, size = 0x4, offset = 0x4, fixed_abs, tag = 'smem constant byte address 0x4 - core index']
  #allocation1 [shape = 'u32[144,128]{1,0:T(1,128)}', space=vmem, size = 0x12000, scoped, tag = 'internal scratch']
  #allocation2 [shape = 'f32[16,256]{1,0:T(8,128)}', space=vmem, size = 0x4000, scoped, tag = 'scratch operand']
  %s0 = inlined_call_operand.hbm [shape: f32[16,100], index: 0, kind: input, shape index: {}]
  %s1 = inlined_call_operand.hbm [shape: f32[100,256], index: 1, kind: input, shape index: {}]
  %s2 = inlined_call_operand.vmem [shape: f32[1,256], index: 2, kind: input, shape index: {}]
  %s3 = inlined_call_operand.hbm [shape: f32[32,128], index: 3, kind: input, shape index: {}]
  %s4 = inlined_call_operand.hbm [shape: f32[32,128], index: 4, kind: input, shape index: {}]
  %s5 = inlined_call_operand.hbm [shape: f32[16,32], index: 5, kind: output, shape index: {0}]
  %s6 = inlined_call_operand.hbm [shape: f32[16,32], index: 6, kind: output, shape index: {1}]
  %7 = xla_tuple %s5, %s6
  %s8 = sld [smem:[#allocation0]]
  $region54: #{tpu_custom_call.1} parent=0
    _
  %s10 = ssub.s32 1, %s8
  %s11 = scalar_select 0, %s10, %s8
  $region1: #{tpu_custom_call.1} parent=0
    #allocation3 [shape = 'u8[8192]{0}', space=vmem, size = 0x2000, scoped, tag = 'input window, operand 0, single buffered']
    #allocation4 [shape = 's32[1]{0}', space=sflag, size = 0x4, scoped, tag = 'scoped memory for tpu_custom_call.1']
    #allocation5 [shape = 's32[1]{0}', space=sflag, size = 0x4, scoped, tag = 'scoped memory for tpu_custom_call.1']
    #allocation6 [shape = 'u8[106496]{0}', space=vmem, size = 0x1a000, scoped, tag = 'input window, operand 1, single buffered']
    #allocation7 [shape = 's32[1]{0}', space=sflag, size = 0x4, scoped, tag = 'scoped memory for tpu_custom_call.1']
    #allocation8 [shape = 'u8[16384]{0}', space=vmem, size = 0x4000, scoped, tag = 'input window, operand 3, single buffered']
    #allocation9 [shape = 'u8[16384]{0}', space=vmem, size = 0x4000, scoped, tag = 'input window, operand 4, single buffered']
    #allocation10 [shape = 's32[1]{0}', space=sflag, size = 0x4, scoped, tag = 'scoped memory for tpu_custom_call.1']
    #allocation11 [shape = 'u8[8192]{0}', space=vmem, size = 0x2000, scoped, tag = 'output window, operand 0, single buffered']
    #allocation12 [shape = 'u8[8192]{0}', space=vmem, size = 0x2000, scoped, tag = 'output window, operand 1, single buffered']
    #allocation13 [shape = 's32[1]{0}', space=sflag, size = 0x4, scoped, tag = 'scoped memory for tpu_custom_call.1']
    %12 = vsyncpa [#allocation4], 0
    %13 = vsyncpa [#allocation7], 0
    %14 = vsyncpa [#allocation10], 0
    %15 = vsyncpa [#allocation5], 0
    %16 = vsyncpa [#allocation13], 0
    // Predicated region
    $region2: #{tpu_custom_call.1} parent=1 // pred_check
      _
    $region3: #{tpu_custom_call.1} parent=1 // pred_check_branch
      %18 = sbr.rel (0) target = $region5
    $region4: #{tpu_custom_call.1} parent=1 // pred_region
      %s20 = ssub.s32 256, 256
      %21 = vsyncadd [#allocation4], %s20
      %s22 = sshll.u32 [#allocation3], 4
      %s23 = int_to_ptr.vmem [resolvable:$true] %s22
      %28 = dma.hbm_to_vmem [thread:$0]  %s0, 256, %s23, [#allocation4], 128, 128, 8
    $region5: #{tpu_custom_call.1} parent=1 // pred_fallthru
      _
    // Predicated region
    $region6: #{tpu_custom_call.1} parent=1 // pred_check
      _
    $region7: #{tpu_custom_call.1} parent=1 // pred_check_branch
      %30 = sbr.rel (0) target = $region9
    $region8: #{tpu_custom_call.1} parent=1 // pred_region
      %s32 = ssub.s32 3328, 3328
      %33 = vsyncadd [#allocation7], %s32
      %s34 = sshll.u32 [#allocation6], 4
      %s35 = int_to_ptr.vmem [resolvable:$true] %s34
      %40 = dma.hbm_to_vmem [thread:$0]  %s1, 3328, %s35, [#allocation7], 256, 256, 16
    $region9: #{tpu_custom_call.1} parent=1 // pred_fallthru
      _
    // Predicated region
    $region10: #{tpu_custom_call.1} parent=1 // pred_check
      _
    $region11: #{tpu_custom_call.1} parent=1 // pred_check_branch
      %42 = sbr.rel (0) target = $region13
    $region12: #{tpu_custom_call.1} parent=1 // pred_region
      _
    $region13: #{tpu_custom_call.1} parent=1 // pred_fallthru
      _
    // Predicated region
    $region14: #{tpu_custom_call.1} parent=1 // pred_check
      _
    $region15: #{tpu_custom_call.1} parent=1 // pred_check_branch
      %44 = sbr.rel (0) target = $region17
    $region16: #{tpu_custom_call.1} parent=1 // pred_region
      %s46 = ssub.s32 512, 512
      %47 = vsyncadd [#allocation7], %s46
      %s48 = sshll.u32 [#allocation8], 4
      %s49 = int_to_ptr.vmem [resolvable:$true] %s48
      %54 = dma.hbm_to_vmem [thread:$0]  %s3, 512, %s49, [#allocation7], 128, 128, 8
    $region17: #{tpu_custom_call.1} parent=1 // pred_fallthru
      _
    // Predicated region
    $region18: #{tpu_custom_call.1} parent=1 // pred_check
      _
    $region19: #{tpu_custom_call.1} parent=1 // pred_check_branch
      %56 = sbr.rel (0) target = $region21
    $region20: #{tpu_custom_call.1} parent=1 // pred_region
      %s58 = ssub.s32 512, 512
      %59 = vsyncadd [#allocation10], %s58
      %s60 = sshll.u32 [#allocation9], 4
      %s61 = int_to_ptr.vmem [resolvable:$true] %s60
      %66 = dma.hbm_to_vmem [thread:$0]  %s4, 512, %s61, [#allocation10], 128, 128, 8
    $region21: #{tpu_custom_call.1} parent=1 // pred_fallthru
      _
    // Predicated region
    $region22: #{tpu_custom_call.1} parent=1 // pred_check
      _
    $region23: #{tpu_custom_call.1} parent=1 // pred_check_branch
      %68 = sbr.rel (0) target = $region25
    $region24: #{tpu_custom_call.1} parent=1 // pred_region
      %69 = dma.done [#allocation4], 256
    $region25: #{tpu_custom_call.1} parent=1 // pred_fallthru
      _
    // Predicated region
    $region26: #{tpu_custom_call.1} parent=1 // pred_check
      _
    $region27: #{tpu_custom_call.1} parent=1 // pred_check_branch
      %71 = sbr.rel (0) target = $region29
    $region28: #{tpu_custom_call.1} parent=1 // pred_region
      %72 = dma.done [#allocation7], 3328
    $region29: #{tpu_custom_call.1} parent=1 // pred_fallthru
      _
    // Predicated region
    $region30: #{tpu_custom_call.1} parent=1 // pred_check
      _
    $region31: #{tpu_custom_call.1} parent=1 // pred_check_branch
      %74 = sbr.rel (0) target = $region33
    $region32: #{tpu_custom_call.1} parent=1 // pred_region
      %75 = dma.done [#allocation7], 512
    $region33: #{tpu_custom_call.1} parent=1 // pred_fallthru
      _
    // Predicated region
    $region34: #{tpu_custom_call.1} parent=1 // pred_check
      _
    $region35: #{tpu_custom_call.1} parent=1 // pred_check_branch
      %77 = sbr.rel (0) target = $region37
    $region36: #{tpu_custom_call.1} parent=1 // pred_region
      %78 = dma.done [#allocation10], 512
    $region37: #{tpu_custom_call.1} parent=1 // pred_fallthru
      _
    %v79 = vld [vmem:[#allocation3] sm:$0xff]
    %v80 = vld [vmem:[#allocation3 + $0x8] sm:$0xff]
    %v81 = vld [vmem:[#allocation6] sm:$0xff]
    %v82 = vld [vmem:[#allocation6 + $0x8] sm:$0xff]
    %v83 = vld [vmem:[#allocation6 + $0x10] sm:$0xff]
    %v84 = vld [vmem:[#allocation6 + $0x18] sm:$0xff]
    %v85 = vld [vmem:[#allocation6 + $0x20] sm:$0xff]
    %v86 = vld [vmem:[#allocation6 + $0x28] sm:$0xff]
    %v87 = vld [vmem:[#allocation6 + $0x30] sm:$0xff]
    %v88 = vld [vmem:[#allocation6 + $0x38] sm:$0xff]
    %v89 = vld [vmem:[#allocation6 + $0x40] sm:$0xff]
    %v90 = vld [vmem:[#allocation6 + $0x48] sm:$0xff]
    %v91 = vld [vmem:[#allocation6 + $0x50] sm:$0xff]
    %v92 = vld [vmem:[#allocation6 + $0x58] sm:$0xff]
    %v93 = vld [vmem:[#allocation6 + $0x60] sm:$0xff]
    %v94 = vld [vmem:[#allocation6 + $0x68] sm:$0xff]
    %v95 = vld [vmem:[#allocation6 + $0x70] sm:$0xff]
    %v96 = vld [vmem:[#allocation6 + $0x78] sm:$0xff]
    %v97 = vld [vmem:[#allocation6 + $0x80] sm:$0xff]
    %v98 = vld [vmem:[#allocation6 + $0x88] sm:$0xff]
    %v99 = vld [vmem:[#allocation6 + $0x90] sm:$0xff]
    %v100 = vld [vmem:[#allocation6 + $0x98] sm:$0xff]
    %v101 = vld [vmem:[#allocation6 + $0xa0] sm:$0xff]
    %v102 = vld [vmem:[#allocation6 + $0xa8] sm:$0xff]
    %v103 = vld [vmem:[#allocation6 + $0xb0] sm:$0xff]
    %v104 = vld [vmem:[#allocation6 + $0xb8] sm:$0xff]
    %v105 = vld [vmem:[#allocation6 + $0xc0] sm:$0xf]
    %v106 = vld [vmem:[#allocation6 + $0xc8] sm:$0xf]
    %v107 = vld [vmem:[%s2] sm:$0x3]
    %v109 = vlaneseq
    %v110 = vshrl.u32 %v109, 7
    %v111 = vsub.s32 0, %v110
    %v112 = vrot.slane %v107, %v111
    %v113 = vlaneseq
    %v114 = vshrl.u32 %v113, 7
    %v115 = vsub.s32 1, %v114
    %v116 = vrot.slane %v107, %v115
    %vm119 = vcmask 818176
    %v121 = vsel %vm119, %v79, 0
    %v124 = vsel %vm119, %v80, 0
    %vm126 = vcmask 1043456
    %v128 = vsel %vm126, %v105, 0
    %v131 = vsel %vm126, %v106, 0
    %133 = vmatprep.subr.mxu0 %v82
    %134 = vmatpush1.msra.mxu0 %v81
    %135 = vmatprep.subr.mxu0 %v84
    %136 = vmatpush1.msra.mxu0 %v83
    %137 = vmatprep.subr.mxu0 %v86
    %138 = vmatpush1.msra.mxu0 %v85
    %139 = vmatprep.subr.mxu0 %v88
    %140 = vmatpush1.msra.mxu0 %v87
    %141 = vmatprep.subr.mxu0 %v90
    %142 = vmatpush1.msra.mxu0 %v89
    %143 = vmatprep.subr.mxu0 %v92
    %144 = vmatpush1.msra.mxu0 %v91
    %145 = vmatprep.subr.mxu0 %v94
    %146 = vmatpush1.msra.mxu0 %v93
    %147 = vmatprep.subr.mxu0 %v96
    %148 = vmatpush1.msra.mxu0 %v95
    %149 = vmatprep.subr.mxu0 %v98
    %150 = vmatpush1.msra.mxu0 %v97
    %151 = vmatprep.subr.mxu0 %v100
    %152 = vmatpush1.msra.mxu0 %v99
    %153 = vmatprep.subr.mxu0 %v102
    %154 = vmatpush1.msra.mxu0 %v101
    %155 = vmatprep.subr.mxu0 %v104
    %156 = vmatpush1.msra.mxu0 %v103
    %157 = vmatprep.subr.mxu0 %v131
    %158 = vmatpush1.msra.mxu0 %v128
    %159 = vmatprep.subr.mxu0 0.0
    %160 = vmatpush1.msra.mxu0 0.0
    %161 = vmatprep.subr.mxu0 0.0
    %162 = vmatpush1.msra.mxu0 0.0
    %163 = vmatprep.subr.mxu0 0.0
    %164 = vmatpush1.msra.mxu0 0.0
    %165 = vmatprep.subr.mxu0 0.0
    %166 = vmatpush1.msra.mxu0 0.0
    %167 = vmatprep.subr.mxu0 0.0
    %168 = vmatpush1.msra.mxu0 0.0
    %169 = vmatprep.subr.mxu0 0.0
    %170 = vmatpush1.msra.mxu0 0.0
    %171 = vmatprep.subr.mxu0 0.0
    %172 = vmatpush1.msra.mxu0 0.0
    %173 = vmatprep.subr.mxu0 0.0
    %174 = vmatpush1.msra.mxu0 0.0
    %175 = vmatprep.subr.mxu0 0.0
    %176 = vmatpush1.msra.mxu0 0.0
    %177 = vmatprep.subr.mxu0 0.0
    %178 = vmatpush1.msra.mxu0 0.0
    %179 = vmatprep.subr.mxu0 0.0
    %180 = vmatpush1.msra.mxu0 0.0
    %181 = vmatprep.subr.mxu0 0.0
    %182 = vmatpush1.msra.mxu0 0.0
    %183 = vmatprep.subr.mxu0 0.0
    %184 = vmatpush1.msra.mxu0 0.0
    %185 = vmatprep.subr.mxu0 0.0
    %186 = vmatpush1.msra.mxu0 0.0
    %187 = vmatprep.subr.mxu0 0.0
    %188 = vmatpush1.msra.mxu0 0.0
    %189 = vmatprep.subr.mxu0 0.0
    %190 = vmatpush1.msra.mxu0 0.0
    %191 = vmatprep.subr.mxu0 0.0
    %192 = vmatpush1.msra.mxu0 0.0
    %193 = vmatprep.subr.mxu0 0.0
    %194 = vmatpush1.msra.mxu0 0.0
    %195 = vmatprep.subr.mxu0 0.0
    %196 = vmatpush1.msra.mxu0 0.0
    %197 = vmatprep.mubr.f32.mxu0 0.0
    %198 = vmatmul.mubr.f32.gmra.mrb[0].mxu0 %v121
    %v199 = vpop.f32.mrb[0].mxu0
    %v200 = vadd.f32 %v112, %v199
    %v201 = vpop.f32.mrb[0].mxu0
    %v202 = vadd.f32 %v116, %v201
    %203 = vmatprep.mubr.f32.mxu0 0.0
    %204 = vmatmul.mubr.f32.gmra.mrb[0].mxu0 %v124
    %v205 = vpop.f32.mrb[0].mxu0
    %v206 = vadd.f32 %v112, %v205
    %v207 = vpop.f32.mrb[0].mxu0
    %v208 = vadd.f32 %v116, %v207
    %209 = vdwg.mxu0
    %210 = vst [vmem:[#allocation2] sm:$0xff] %v200
    %211 = vst [vmem:[#allocation2 + $0x8] sm:$0xff] %v202
    %212 = vst [vmem:[#allocation2 + $0x10] sm:$0xff] %v206
    %213 = vst [vmem:[#allocation2 + $0x18] sm:$0xff] %v208
    %v214 = vld [vmem:[#allocation8] sm:$0xff]
    %v215 = vld [vmem:[#allocation8 + $0x8] sm:$0xff]
    %v216 = vld [vmem:[#allocation8 + $0x10] sm:$0xff]
    %v217 = vld [vmem:[#allocation8 + $0x18] sm:$0xff]
    %v218 = vld [vmem:[#allocation9] sm:$0xff]
    %v219 = vld [vmem:[#allocation9 + $0x8] sm:$0xff]
    %v220 = vld [vmem:[#allocation9 + $0x10] sm:$0xff]
    %v221 = vld [vmem:[#allocation9 + $0x18] sm:$0xff]
    %v222 = vld [vmem:[#allocation2] sm:$0x3]
    %vm223 = vcmask 261120
    %v225 = vsel %vm223, 0.0, 0
    %227 = vmatprep.subr.mxu0 0.0
    %228 = vmatpush1.msra.mxu0 %v214
    %229 = vmatprep.subr.mxu0 0.0
    %230 = vmatpush1.msra.mxu0 %v215
    %231 = vmatprep.subr.mxu0 0.0
    %232 = vmatpush1.msra.mxu0 %v216
    %233 = vmatprep.subr.mxu0 0.0
    %234 = vmatpush1.msra.mxu0 %v217
    %235 = vmatprep.subr.mxu0 0.0
    %236 = vmatpush1.msra.mxu0 0.0
    %237 = vmatprep.subr.mxu0 0.0
    %238 = vmatpush1.msra.mxu0 0.0
    %239 = vmatprep.subr.mxu0 0.0
    %240 = vmatpush1.msra.mxu0 0.0
    %241 = vmatprep.subr.mxu0 0.0
    %242 = vmatpush1.msra.mxu0 0.0
    %243 = vmatprep.subr.mxu0 0.0
    %244 = vmatpush1.msra.mxu0 0.0
    %245 = vmatprep.subr.mxu0 0.0
    %246 = vmatpush1.msra.mxu0 0.0
    %247 = vmatprep.subr.mxu0 0.0
    %248 = vmatpush1.msra.mxu0 0.0
    %249 = vmatprep.subr.mxu0 0.0
    %250 = vmatpush1.msra.mxu0 0.0
    %251 = vmatprep.subr.mxu0 0.0
    %252 = vmatpush1.msra.mxu0 0.0
    %253 = vmatprep.subr.mxu0 0.0
    %254 = vmatpush1.msra.mxu0 0.0
    %255 = vmatprep.subr.mxu0 0.0
    %256 = vmatpush1.msra.mxu0 0.0
    %257 = vmatprep.subr.mxu0 0.0
    %258 = vmatpush1.msra.mxu0 0.0
    %259 = vmatprep.subr.mxu0 0.0
    %260 = vmatpush1.msra.mxu0 0.0
    %261 = vmatprep.subr.mxu0 0.0
    %262 = vmatpush1.msra.mxu0 0.0
    %263 = vmatprep.subr.mxu0 0.0
    %264 = vmatpush1.msra.mxu0 0.0
    %265 = vmatprep.subr.mxu0 0.0
    %266 = vmatpush1.msra.mxu0 0.0
    %267 = vmatprep.subr.mxu0 0.0
    %268 = vmatpush1.msra.mxu0 0.0
    %269 = vmatprep.subr.mxu0 0.0
    %270 = vmatpush1.msra.mxu0 0.0
    %271 = vmatprep.subr.mxu0 0.0
    %272 = vmatpush1.msra.mxu0 0.0
    %273 = vmatprep.subr.mxu0 0.0
    %274 = vmatpush1.msra.mxu0 0.0
    %275 = vmatprep.subr.mxu0 0.0
    %276 = vmatpush1.msra.mxu0 0.0
    %277 = vmatprep.subr.mxu0 0.0
    %278 = vmatpush1.msra.mxu0 0.0
    %279 = vmatprep.subr.mxu0 0.0
    %280 = vmatpush1.msra.mxu0 0.0
    %281 = vmatprep.subr.mxu0 0.0
    %282 = vmatpush1.msra.mxu0 0.0
    %283 = vmatprep.subr.mxu0 0.0
    %284 = vmatpush1.msra.mxu0 0.0
    %285 = vmatprep.subr.mxu0 0.0
    %286 = vmatpush1.msra.mxu0 0.0
    %287 = vmatprep.subr.mxu0 0.0
    %288 = vmatpush1.msra.mxu0 0.0
    %289 = vmatprep.subr.mxu0 0.0
    %290 = vmatpush1.msra.mxu0 0.0
    %291 = vmatprep.mubr.f32.mxu0 0.0
    %292 = vmatmul.mubr.f32.gmra.mrb[0].mxu0 %v225
    %v293 = vpop.f32.mrb[0].mxu0
    %v294 = vadd.f32 0.0, %v293
    %v295 = vpop.f32.mrb[0].mxu0
    %296 = vdwg.mxu0
    %v297 = vadd.f32 %v222, %v294
    %v298 = vld [vmem:[#allocation2 + $0x18] sm:$0xc0]
    %299 = vmatprep.subr.mxu0 0.0
    %300 = vmatpush1.msra.mxu0 %v218
    %301 = vmatprep.subr.mxu0 0.0
    %302 = vmatpush1.msra.mxu0 %v219
    %303 = vmatprep.subr.mxu0 0.0
    %304 = vmatpush1.msra.mxu0 %v220
    %305 = vmatprep.subr.mxu0 0.0
    %306 = vmatpush1.msra.mxu0 %v221
    %307 = vmatprep.subr.mxu0 0.0
    %308 = vmatpush1.msra.mxu0 0.0
    %309 = vmatprep.subr.mxu0 0.0
    %310 = vmatpush1.msra.mxu0 0.0
    %311 = vmatprep.subr.mxu0 0.0
    %312 = vmatpush1.msra.mxu0 0.0
    %313 = vmatprep.subr.mxu0 0.0
    %314 = vmatpush1.msra.mxu0 0.0
    %315 = vmatprep.subr.mxu0 0.0
    %316 = vmatpush1.msra.mxu0 0.0
    %317 = vmatprep.subr.mxu0 0.0
    %318 = vmatpush1.msra.mxu0 0.0
    %319 = vmatprep.subr.mxu0 0.0
    %320 = vmatpush1.msra.mxu0 0.0
    %321 = vmatprep.subr.mxu0 0.0
    %322 = vmatpush1.msra.mxu0 0.0
    %323 = vmatprep.subr.mxu0 0.0
    %324 = vmatpush1.msra.mxu0 0.0
    %325 = vmatprep.subr.mxu0 0.0
    %326 = vmatpush1.msra.mxu0 0.0
    %327 = vmatprep.subr.mxu0 0.0
    %328 = vmatpush1.msra.mxu0 0.0
    %329 = vmatprep.subr.mxu0 0.0
    %330 = vmatpush1.msra.mxu0 0.0
    %331 = vmatprep.subr.mxu0 0.0
    %332 = vmatpush1.msra.mxu0 0.0
    %333 = vmatprep.subr.mxu0 0.0
    %334 = vmatpush1.msra.mxu0 0.0
    %335 = vmatprep.subr.mxu0 0.0
    %336 = vmatpush1.msra.mxu0 0.0
    %337 = vmatprep.subr.mxu0 0.0
    %338 = vmatpush1.msra.mxu0 0.0
    %339 = vmatprep.subr.mxu0 0.0
    %340 = vmatpush1.msra.mxu0 0.0
    %341 = vmatprep.subr.mxu0 0.0
    %342 = vmatpush1.msra.mxu0 0.0
    %343 = vmatprep.subr.mxu0 0.0
    %344 = vmatpush1.msra.mxu0 0.0
    %345 = vmatprep.subr.mxu0 0.0
    %346 = vmatpush1.msra.mxu0 0.0
    %347 = vmatprep.subr.mxu0 0.0
    %348 = vmatpush1.msra.mxu0 0.0
    %349 = vmatprep.subr.mxu0 0.0
    %350 = vmatpush1.msra.mxu0 0.0
    %351 = vmatprep.subr.mxu0 0.0
    %352 = vmatpush1.msra.mxu0 0.0
    %353 = vmatprep.subr.mxu0 0.0
    %354 = vmatpush1.msra.mxu0 0.0
    %355 = vmatprep.subr.mxu0 0.0
    %356 = vmatpush1.msra.mxu0 0.0
    %357 = vmatprep.subr.mxu0 0.0
    %358 = vmatpush1.msra.mxu0 0.0
    %359 = vmatprep.subr.mxu0 0.0
    %360 = vmatpush1.msra.mxu0 0.0
    %361 = vmatprep.subr.mxu0 0.0
    %362 = vmatpush1.msra.mxu0 0.0
    %363 = vmatprep.mubr.f32.mxu0 0.0
    %364 = vmatmul.mubr.f32.gmra.mrb[0].mxu0 %v225
    %v365 = vpop.f32.mrb[0].mxu0
    %v366 = vadd.f32 0.0, %v365
    %v367 = vpop.f32.mrb[0].mxu0
    %368 = vdwg.mxu0
    %v370 = vrot.slane %v366, 2
    %v372 = vadd.f32 %v298, %v370
    %v373 = vxor.u32 %v297, 2147483648
    %v374 = vmul.f32 %v373, 1.442695
    %v375 = vpow.pop %v374
    %v376 = vadd.f32 %v375, 1.0
    %v377 = vrcp.pop %v376
    %v378 = vmul.f32 1.0, %v377
    %v379 = vtanh.pop %v297
    %v380 = vmul.f32 %v378, 0.0
    %382 = vrot.lane.b32.xlu0 %v379, 64
    %v383 = vpop.permute.xlu0 %382
    %v385 = vmul.f32 %v378, %v383
    %387 = vrot.lane.b32.xlu0 %v385, 32
    %v388 = vpop.permute.xlu0 %387
    %v390 = vadd.f32 %v380, %v388
    %v391 = vtanh.pop %v390
    %393 = vrot.lane.b32.xlu0 %v391, 64
    %v394 = vpop.permute.xlu0 %393
    %v396 = vmul.f32 %v378, %v394
    %v397 = vxor.u32 %v372, 2147483648
    %v398 = vmul.f32 %v397, 1.442695
    %v399 = vpow.pop %v398
    %v400 = vadd.f32 %v399, 1.0
    %v401 = vrcp.pop %v400
    %v402 = vmul.f32 1.0, %v401
    %v403 = vtanh.pop %v372
    %v404 = vmul.f32 %v402, 0.0
    %406 = vrot.lane.b32.xlu0 %v403, 64
    %v407 = vpop.permute.xlu0 %406
    %v409 = vmul.f32 %v402, %v407
    %411 = vrot.lane.b32.xlu0 %v409, 32
    %v412 = vpop.permute.xlu0 %411
    %v414 = vadd.f32 %v404, %v412
    %v415 = vtanh.pop %v414
    %417 = vrot.lane.b32.xlu0 %v415, 64
    %v418 = vpop.permute.xlu0 %417
    %v420 = vmul.f32 %v402, %v418
    %422 = vrot.lane.b32.xlu0 %v396, 32
    %v423 = vpop.permute.xlu0 %422
    %vm425 = vcmask 254976
    %426 = vst.msk [vmem:[#allocation11] sm:$0x3] %vm425, %v423
    %428 = vrot.lane.b32.xlu0 %v420, 32
    %v429 = vpop.permute.xlu0 %428
    %vm431 = vcmask 261126
    %432 = vst.msk [vmem:[#allocation12 + $0x8] sm:$0xc0] %vm431, %v429
    %v433 = vld [vmem:[#allocation2] sm:$0xc]
    %v434 = vsel %vm223, %v423, 0
    %436 = vmatprep.subr.mxu0 0.0
    %437 = vmatpush1.msra.mxu0 %v214
    %438 = vmatprep.subr.mxu0 0.0
    %439 = vmatpush1.msra.mxu0 %v215
    %440 = vmatprep.subr.mxu0 0.0
    %441 = vmatpush1.msra.mxu0 %v216
    %442 = vmatprep.subr.mxu0 0.0
    %443 = vmatpush1.msra.mxu0 %v217
    %444 = vmatprep.subr.mxu0 0.0
    %445 = vmatpush1.msra.mxu0 0.0
    %446 = vmatprep.subr.mxu0 0.0
    %447 = vmatpush1.msra.mxu0 0.0
    %448 = vmatprep.subr.mxu0 0.0
    %449 = vmatpush1.msra.mxu0 0.0
    %450 = vmatprep.subr.mxu0 0.0
    %451 = vmatpush1.msra.mxu0 0.0
    %452 = vmatprep.subr.mxu0 0.0
    %453 = vmatpush1.msra.mxu0 0.0
    %454 = vmatprep.subr.mxu0 0.0
    %455 = vmatpush1.msra.mxu0 0.0
    %456 = vmatprep.subr.mxu0 0.0
    %457 = vmatpush1.msra.mxu0 0.0
    %458 = vmatprep.subr.mxu0 0.0
    %459 = vmatpush1.msra.mxu0 0.0
    %460 = vmatprep.subr.mxu0 0.0
    %461 = vmatpush1.msra.mxu0 0.0
    %462 = vmatprep.subr.mxu0 0.0
    %463 = vmatpush1.msra.mxu0 0.0
    %464 = vmatprep.subr.mxu0 0.0
    %465 = vmatpush1.msra.mxu0 0.0
    %466 = vmatprep.subr.mxu0 0.0
    %467 = vmatpush1.msra.mxu0 0.0
    %468 = vmatprep.subr.mxu0 0.0
    %469 = vmatpush1.msra.mxu0 0.0
    %470 = vmatprep.subr.mxu0 0.0
    %471 = vmatpush1.msra.mxu0 0.0
    %472 = vmatprep.subr.mxu0 0.0
    %473 = vmatpush1.msra.mxu0 0.0
    %474 = vmatprep.subr.mxu0 0.0
    %475 = vmatpush1.msra.mxu0 0.0
    %476 = vmatprep.subr.mxu0 0.0
    %477 = vmatpush1.msra.mxu0 0.0
    %478 = vmatprep.subr.mxu0 0.0
    %479 = vmatpush1.msra.mxu0 0.0
    %480 = vmatprep.subr.mxu0 0.0
    %481 = vmatpush1.msra.mxu0 0.0
    %482 = vmatprep.subr.mxu0 0.0
    %483 = vmatpush1.msra.mxu0 0.0
    %484 = vmatprep.subr.mxu0 0.0
    %485 = vmatpush1.msra.mxu0 0.0
    %486 = vmatprep.subr.mxu0 0.0
    %487 = vmatpush1.msra.mxu0 0.0
    %488 = vmatprep.subr.mxu0 0.0
    %489 = vmatpush1.msra.mxu0 0.0
    %490 = vmatprep.subr.mxu0 0.0
    %491 = vmatpush1.msra.mxu0 0.0
    %492 = vmatprep.subr.mxu0 0.0
    %493 = vmatpush1.msra.mxu0 0.0
    %494 = vmatprep.subr.mxu0 0.0
    %495 = vmatpush1.msra.mxu0 0.0
    %496 = vmatprep.subr.mxu0 0.0
    %497 = vmatpush1.msra.mxu0 0.0
    %498 = vmatprep.subr.mxu0 0.0
    %499 = vmatpush1.msra.mxu0 0.0
    %500 = vmatprep.mubr.f32.mxu0 0.0
    %501 = vmatmul.mubr.f32.gmra.mrb[0].mxu0 %v434
    %v502 = vpop.f32.mrb[0].mxu0
    %v503 = vadd.f32 0.0, %v502
    %v504 = vpop.f32.mrb[0].mxu0
    %505 = vdwg.mxu0
    %v507 = vrot.slane %v503, 6
    %v509 = vadd.f32 %v433, %v507
    %v510 = vld [vmem:[#allocation2 + $0x18] sm:$0x30]
    %v511 = vrot.slane %v420, 6
    %512 = vrot.lane.b32.xlu0 %v511, 32
    %v513 = vpop.permute.xlu0 %512
    %v514 = vsel %vm223, %v513, 0
    %516 = vmatprep.subr.mxu0 0.0
    %517 = vmatpush1.msra.mxu0 %v218
    %518 = vmatprep.subr.mxu0 0.0
    %519 = vmatpush1.msra.mxu0 %v219
    %520 = vmatprep.subr.mxu0 0.0
    %521 = vmatpush1.msra.mxu0 %v220
    %522 = vmatprep.subr.mxu0 0.0
    %523 = vmatpush1.msra.mxu0 %v221
    %524 = vmatprep.subr.mxu0 0.0
    %525 = vmatpush1.msra.mxu0 0.0
    %526 = vmatprep.subr.mxu0 0.0
    %527 = vmatpush1.msra.mxu0 0.0
    %528 = vmatprep.subr.mxu0 0.0
    %529 = vmatpush1.msra.mxu0 0.0
    %530 = vmatprep.subr.mxu0 0.0
    %531 = vmatpush1.msra.mxu0 0.0
    %532 = vmatprep.subr.mxu0 0.0
    %533 = vmatpush1.msra.mxu0 0.0
    %534 = vmatprep.subr.mxu0 0.0
    %535 = vmatpush1.msra.mxu0 0.0
    %536 = vmatprep.subr.mxu0 0.0
    %537 = vmatpush1.msra.mxu0 0.0
    %538 = vmatprep.subr.mxu0 0.0
    %539 = vmatpush1.msra.mxu0 0.0
    %540 = vmatprep.subr.mxu0 0.0
    %541 = vmatpush1.msra.mxu0 0.0
    %542 = vmatprep.subr.mxu0 0.0
    %543 = vmatpush1.msra.mxu0 0.0
    %544 = vmatprep.subr.mxu0 0.0
    %545 = vmatpush1.msra.mxu0 0.0
    %546 = vmatprep.subr.mxu0 0.0
    %547 = vmatpush1.msra.mxu0 0.0
    %548 = vmatprep.subr.mxu0 0.0
    %549 = vmatpush1.msra.mxu0 0.0
    %550 = vmatprep.subr.mxu0 0.0
    %551 = vmatpush1.msra.mxu0 0.0
    %552 = vmatprep.subr.mxu0 0.0
    %553 = vmatpush1.msra.mxu0 0.0
    %554 = vmatprep.subr.mxu0 0.0
    %555 = vmatpush1.msra.mxu0 0.0
    %556 = vmatprep.subr.mxu0 0.0
    %557 = vmatpush1.msra.mxu0 0.0
    %558 = vmatprep.subr.mxu0 0.0
    %559 = vmatpush1.msra.mxu0 0.0
    %560 = vmatprep.subr.mxu0 0.0
    %561 = vmatpush1.msra.mxu0 0.0
    %562 = vmatprep.subr.mxu0 0.0
    %563 = vmatpush1.msra.mxu0 0.0
    %564 = vmatprep.subr.mxu0 0.0
    %565 = vmatpush1.msra.mxu0 0.0
    %566 = vmatprep.subr.mxu0 0.0
    %567 = vmatpush1.msra.mxu0 0.0
    %568 = vmatprep.subr.mxu0 0.0
    %569 = vmatpush1.msra.mxu0 0.0
    %570 = vmatprep.subr.mxu0 0.0
    %571 = vmatpush1.msra.mxu0 0.0
    %572 = vmatprep.subr.mxu0 0.0
    %573 = vmatpush1.msra.mxu0 0.0
    %574 = vmatprep.subr.mxu0 0.0
    %575 = vmatpush1.msra.mxu0 0.0
    %576 = vmatprep.subr.mxu0 0.0
    %577 = vmatpush1.msra.mxu0 0.0
    %578 = vmatprep.subr.mxu0 0.0
    %579 = vmatpush1.msra.mxu0 0.0
    %580 = vmatprep.mubr.f32.mxu0 0.0
    %581 = vmatmul.mubr.f32.gmra.mrb[0].mxu0 %v514
    %v582 = vpop.f32.mrb[0].mxu0
    %v583 = vadd.f32 0.0, %v582
    %v584 = vpop.f32.mrb[0].mxu0
    %585 = vdwg.mxu0
    %v587 = vrot.slane %v583, 4
    %v589 = vadd.f32 %v510, %v587
    %v590 = vxor.u32 %v509, 2147483648
    %v591 = vmul.f32 %v590, 1.442695
    %v592 = vpow.pop %v591
    %v593 = vadd.f32 %v592, 1.0
    %v594 = vrcp.pop %v593
    %v595 = vmul.f32 1.0, %v594
    %v596 = vtanh.pop %v509
    %v598 = vrot.slane %v390, 6
    %v600 = vmul.f32 %v595, %v598
    %602 = vrot.lane.b32.xlu0 %v596, 64
    %v603 = vpop.permute.xlu0 %602
    %v605 = vmul.f32 %v595, %v603
    %607 = vrot.lane.b32.xlu0 %v605, 32
    %v608 = vpop.permute.xlu0 %607
    %v610 = vadd.f32 %v600, %v608
    %v611 = vtanh.pop %v610
    %613 = vrot.lane.b32.xlu0 %v611, 64
    %v614 = vpop.permute.xlu0 %613
    %v616 = vmul.f32 %v595, %v614
    %v617 = vxor.u32 %v589, 2147483648
    %v618 = vmul.f32 %v617, 1.442695
    %v619 = vpow.pop %v618
    %v620 = vadd.f32 %v619, 1.0
    %v621 = vrcp.pop %v620
    %v622 = vmul.f32 1.0, %v621
    %v623 = vtanh.pop %v589
    %v625 = vrot.slane %v414, 2
    %v627 = vmul.f32 %v622, %v625
    %629 = vrot.lane.b32.xlu0 %v623, 64
    %v630 = vpop.permute.xlu0 %629
    %v632 = vmul.f32 %v622, %v630
    %634 = vrot.lane.b32.xlu0 %v632, 32
    %v635 = vpop.permute.xlu0 %634
    %v637 = vadd.f32 %v627, %v635
    %v638 = vtanh.pop %v637
    %640 = vrot.lane.b32.xlu0 %v638, 64
    %v641 = vpop.permute.xlu0 %640
    %v643 = vmul.f32 %v622, %v641
    %645 = vrot.lane.b32.xlu0 %v616, 32
    %v646 = vpop.permute.xlu0 %645
    %vm648 = vcmask 257026
    %649 = vst.msk [vmem:[#allocation11] sm:$0xc] %vm648, %v646
    %651 = vrot.lane.b32.xlu0 %v643, 32
    %v652 = vpop.permute.xlu0 %651
    %vm654 = vcmask 259076
    %655 = vst.msk [vmem:[#allocation12 + $0x8] sm:$0x30] %vm654, %v652
    %v656 = vld [vmem:[#allocation2] sm:$0x30]
    %v657 = vrot.slane %v616, 2
    %658 = vrot.lane.b32.xlu0 %v657, 32
    %v659 = vpop.permute.xlu0 %658
    %v660 = vsel %vm223, %v659, 0
    %662 = vmatprep.subr.mxu0 0.0
    %663 = vmatpush1.msra.mxu0 %v214
    %664 = vmatprep.subr.mxu0 0.0
    %665 = vmatpush1.msra.mxu0 %v215
    %666 = vmatprep.subr.mxu0 0.0
    %667 = vmatpush1.msra.mxu0 %v216
    %668 = vmatprep.subr.mxu0 0.0
    %669 = vmatpush1.msra.mxu0 %v217
    %670 = vmatprep.subr.mxu0 0.0
    %671 = vmatpush1.msra.mxu0 0.0
    %672 = vmatprep.subr.mxu0 0.0
    %673 = vmatpush1.msra.mxu0 0.0
    %674 = vmatprep.subr.mxu0 0.0
    %675 = vmatpush1.msra.mxu0 0.0
    %676 = vmatprep.subr.mxu0 0.0
    %677 = vmatpush1.msra.mxu0 0.0
    %678 = vmatprep.subr.mxu0 0.0
    %679 = vmatpush1.msra.mxu0 0.0
    %680 = vmatprep.subr.mxu0 0.0
    %681 = vmatpush1.msra.mxu0 0.0
    %682 = vmatprep.subr.mxu0 0.0
    %683 = vmatpush1.msra.mxu0 0.0
    %684 = vmatprep.subr.mxu0 0.0
    %685 = vmatpush1.msra.mxu0 0.0
    %686 = vmatprep.subr.mxu0 0.0
    %687 = vmatpush1.msra.mxu0 0.0
    %688 = vmatprep.subr.mxu0 0.0
    %689 = vmatpush1.msra.mxu0 0.0
    %690 = vmatprep.subr.mxu0 0.0
    %691 = vmatpush1.msra.mxu0 0.0
    %692 = vmatprep.subr.mxu0 0.0
    %693 = vmatpush1.msra.mxu0 0.0
    %694 = vmatprep.subr.mxu0 0.0
    %695 = vmatpush1.msra.mxu0 0.0
    %696 = vmatprep.subr.mxu0 0.0
    %697 = vmatpush1.msra.mxu0 0.0
    %698 = vmatprep.subr.mxu0 0.0
    %699 = vmatpush1.msra.mxu0 0.0
    %700 = vmatprep.subr.mxu0 0.0
    %701 = vmatpush1.msra.mxu0 0.0
    %702 = vmatprep.subr.mxu0 0.0
    %703 = vmatpush1.msra.mxu0 0.0
    %704 = vmatprep.subr.mxu0 0.0
    %705 = vmatpush1.msra.mxu0 0.0
    %706 = vmatprep.subr.mxu0 0.0
    %707 = vmatpush1.msra.mxu0 0.0
    %708 = vmatprep.subr.mxu0 0.0
    %709 = vmatpush1.msra.mxu0 0.0
    %710 = vmatprep.subr.mxu0 0.0
    %711 = vmatpush1.msra.mxu0 0.0
    %712 = vmatprep.subr.mxu0 0.0
    %713 = vmatpush1.msra.mxu0 0.0
    %714 = vmatprep.subr.mxu0 0.0
    %715 = vmatpush1.msra.mxu0 0.0
    %716 = vmatprep.subr.mxu0 0.0
    %717 = vmatpush1.msra.mxu0 0.0
    %718 = vmatprep.subr.mxu0 0.0
    %719 = vmatpush1.msra.mxu0 0.0
    %720 = vmatprep.subr.mxu0 0.0
    %721 = vmatpush1.msra.mxu0 0.0
    %722 = vmatprep.subr.mxu0 0.0
    %723 = vmatpush1.msra.mxu0 0.0
    %724 = vmatprep.subr.mxu0 0.0
    %725 = vmatpush1.msra.mxu0 0.0
    %726 = vmatprep.mubr.f32.mxu0 0.0
    %727 = vmatmul.mubr.f32.gmra.mrb[0].mxu0 %v660
    %v728 = vpop.f32.mrb[0].mxu0
    %v729 = vadd.f32 0.0, %v728
    %v730 = vpop.f32.mrb[0].mxu0
    %731 = vdwg.mxu0
    %v733 = vrot.slane %v729, 4
    %v735 = vadd.f32 %v656, %v733
    %v736 = vld [vmem:[#allocation2 + $0x18] sm:$0xc]
    %v737 = vrot.slane %v643, 4
    %738 = vrot.lane.b32.xlu0 %v737, 32
    %v739 = vpop.permute.xlu0 %738
    %v740 = vsel %vm223, %v739, 0
    %742 = vmatprep.subr.mxu0 0.0
    %743 = vmatpush1.msra.mxu0 %v218
    %744 = vmatprep.subr.mxu0 0.0
    %745 = vmatpush1.msra.mxu0 %v219
    %746 = vmatprep.subr.mxu0 0.0
    %747 = vmatpush1.msra.mxu0 %v220
    %748 = vmatprep.subr.mxu0 0.0
    %749 = vmatpush1.msra.mxu0 %v221
    %750 = vmatprep.subr.mxu0 0.0
    %751 = vmatpush1.msra.mxu0 0.0
    %752 = vmatprep.subr.mxu0 0.0
    %753 = vmatpush1.msra.mxu0 0.0
    %754 = vmatprep.subr.mxu0 0.0
    %755 = vmatpush1.msra.mxu0 0.0
    %756 = vmatprep.subr.mxu0 0.0
    %757 = vmatpush1.msra.mxu0 0.0
    %758 = vmatprep.subr.mxu0 0.0
    %759 = vmatpush1.msra.mxu0 0.0
    %760 = vmatprep.subr.mxu0 0.0
    %761 = vmatpush1.msra.mxu0 0.0
    %762 = vmatprep.subr.mxu0 0.0
    %763 = vmatpush1.msra.mxu0 0.0
    %764 = vmatprep.subr.mxu0 0.0
    %765 = vmatpush1.msra.mxu0 0.0
    %766 = vmatprep.subr.mxu0 0.0
    %767 = vmatpush1.msra.mxu0 0.0
    %768 = vmatprep.subr.mxu0 0.0
    %769 = vmatpush1.msra.mxu0 0.0
    %770 = vmatprep.subr.mxu0 0.0
    %771 = vmatpush1.msra.mxu0 0.0
    %772 = vmatprep.subr.mxu0 0.0
    %773 = vmatpush1.msra.mxu0 0.0
    %774 = vmatprep.subr.mxu0 0.0
    %775 = vmatpush1.msra.mxu0 0.0
    %776 = vmatprep.subr.mxu0 0.0
    %777 = vmatpush1.msra.mxu0 0.0
    %778 = vmatprep.subr.mxu0 0.0
    %779 = vmatpush1.msra.mxu0 0.0
    %780 = vmatprep.subr.mxu0 0.0
    %781 = vmatpush1.msra.mxu0 0.0
    %782 = vmatprep.subr.mxu0 0.0
    %783 = vmatpush1.msra.mxu0 0.0
    %784 = vmatprep.subr.mxu0 0.0
    %785 = vmatpush1.msra.mxu0 0.0
    %786 = vmatprep.subr.mxu0 0.0
    %787 = vmatpush1.msra.mxu0 0.0
    %788 = vmatprep.subr.mxu0 0.0
    %789 = vmatpush1.msra.mxu0 0.0
    %790 = vmatprep.subr.mxu0 0.0
    %791 = vmatpush1.msra.mxu0 0.0
    %792 = vmatprep.subr.mxu0 0.0
    %793 = vmatpush1.msra.mxu0 0.0
    %794 = vmatprep.subr.mxu0 0.0
    %795 = vmatpush1.msra.mxu0 0.0
    %796 = vmatprep.subr.mxu0 0.0
    %797 = vmatpush1.msra.mxu0 0.0
    %798 = vmatprep.subr.mxu0 0.0
    %799 = vmatpush1.msra.mxu0 0.0
    %800 = vmatprep.subr.mxu0 0.0
    %801 = vmatpush1.msra.mxu0 0.0
    %802 = vmatprep.subr.mxu0 0.0
    %803 = vmatpush1.msra.mxu0 0.0
    %804 = vmatprep.subr.mxu0 0.0
    %805 = vmatpush1.msra.mxu0 0.0
    %806 = vmatprep.mubr.f32.mxu0 0.0
    %807 = vmatmul.mubr.f32.gmra.mrb[0].mxu0 %v740
    %v808 = vpop.f32.mrb[0].mxu0
    %v809 = vadd.f32 0.0, %v808
    %v810 = vpop.f32.mrb[0].mxu0
    %811 = vdwg.mxu0
    %v813 = vrot.slane %v809, 6
    %v815 = vadd.f32 %v736, %v813
    %v816 = vxor.u32 %v735, 2147483648
    %v817 = vmul.f32 %v816, 1.442695
    %v818 = vpow.pop %v817
    %v819 = vadd.f32 %v818, 1.0
    %v820 = vrcp.pop %v819
    %v821 = vmul.f32 1.0, %v820
    %v822 = vtanh.pop %v735
    %v824 = vrot.slane %v610, 6
    %v826 = vmul.f32 %v821, %v824
    %828 = vrot.lane.b32.xlu0 %v822, 64
    %v829 = vpop.permute.xlu0 %828
    %v831 = vmul.f32 %v821, %v829
    %833 = vrot.lane.b32.xlu0 %v831, 32
    %v834 = vpop.permute.xlu0 %833
    %v836 = vadd.f32 %v826, %v834
    %v837 = vtanh.pop %v836
    %839 = vrot.lane.b32.xlu0 %v837, 64
    %v840 = vpop.permute.xlu0 %839
    %v842 = vmul.f32 %v821, %v840
    %v843 = vxor.u32 %v815, 2147483648
    %v844 = vmul.f32 %v843, 1.442695
    %v845 = vpow.pop %v844
    %v846 = vadd.f32 %v845, 1.0
    %v847 = vrcp.pop %v846
    %v848 = vmul.f32 1.0, %v847
    %v849 = vtanh.pop %v815
    %v851 = vrot.slane %v637, 2
    %v853 = vmul.f32 %v848, %v851
    %855 = vrot.lane.b32.xlu0 %v849, 64
    %v856 = vpop.permute.xlu0 %855
    %v858 = vmul.f32 %v848, %v856
    %860 = vrot.lane.b32.xlu0 %v858, 32
    %v861 = vpop.permute.xlu0 %860
    %v863 = vadd.f32 %v853, %v861
    %v864 = vtanh.pop %v863
    %866 = vrot.lane.b32.xlu0 %v864, 64
    %v867 = vpop.permute.xlu0 %866
    %v869 = vmul.f32 %v848, %v867
    %871 = vrot.lane.b32.xlu0 %v842, 32
    %v872 = vpop.permute.xlu0 %871
    %874 = vst.msk [vmem:[#allocation11] sm:$0x30] %vm654, %v872
    %876 = vrot.lane.b32.xlu0 %v869, 32
    %v877 = vpop.permute.xlu0 %876
    %879 = vst.msk [vmem:[#allocation12 + $0x8] sm:$0xc] %vm648, %v877
    %v880 = vld [vmem:[#allocation2] sm:$0xc0]
    %v881 = vrot.slane %v842, 4
    %882 = vrot.lane.b32.xlu0 %v881, 32
    %v883 = vpop.permute.xlu0 %882
    %v884 = vsel %vm223, %v883, 0
    %886 = vmatprep.subr.mxu0 0.0
    %887 = vmatpush1.msra.mxu0 %v214
    %888 = vmatprep.subr.mxu0 0.0
    %889 = vmatpush1.msra.mxu0 %v215
    %890 = vmatprep.subr.mxu0 0.0
    %891 = vmatpush1.msra.mxu0 %v216
    %892 = vmatprep.subr.mxu0 0.0
    %893 = vmatpush1.msra.mxu0 %v217
    %894 = vmatprep.subr.mxu0 0.0
    %895 = vmatpush1.msra.mxu0 0.0
    %896 = vmatprep.subr.mxu0 0.0
    %897 = vmatpush1.msra.mxu0 0.0
    %898 = vmatprep.subr.mxu0 0.0
    %899 = vmatpush1.msra.mxu0 0.0
    %900 = vmatprep.subr.mxu0 0.0
    %901 = vmatpush1.msra.mxu0 0.0
    %902 = vmatprep.subr.mxu0 0.0
    %903 = vmatpush1.msra.mxu0 0.0
    %904 = vmatprep.subr.mxu0 0.0
    %905 = vmatpush1.msra.mxu0 0.0
    %906 = vmatprep.subr.mxu0 0.0
    %907 = vmatpush1.msra.mxu0 0.0
    %908 = vmatprep.subr.mxu0 0.0
    %909 = vmatpush1.msra.mxu0 0.0
    %910 = vmatprep.subr.mxu0 0.0
    %911 = vmatpush1.msra.mxu0 0.0
    %912 = vmatprep.subr.mxu0 0.0
    %913 = vmatpush1.msra.mxu0 0.0
    %914 = vmatprep.subr.mxu0 0.0
    %915 = vmatpush1.msra.mxu0 0.0
    %916 = vmatprep.subr.mxu0 0.0
    %917 = vmatpush1.msra.mxu0 0.0
    %918 = vmatprep.subr.mxu0 0.0
    %919 = vmatpush1.msra.mxu0 0.0
    %920 = vmatprep.subr.mxu0 0.0
    %921 = vmatpush1.msra.mxu0 0.0
    %922 = vmatprep.subr.mxu0 0.0
    %923 = vmatpush1.msra.mxu0 0.0
    %924 = vmatprep.subr.mxu0 0.0
    %925 = vmatpush1.msra.mxu0 0.0
    %926 = vmatprep.subr.mxu0 0.0
    %927 = vmatpush1.msra.mxu0 0.0
    %928 = vmatprep.subr.mxu0 0.0
    %929 = vmatpush1.msra.mxu0 0.0
    %930 = vmatprep.subr.mxu0 0.0
    %931 = vmatpush1.msra.mxu0 0.0
    %932 = vmatprep.subr.mxu0 0.0
    %933 = vmatpush1.msra.mxu0 0.0
    %934 = vmatprep.subr.mxu0 0.0
    %935 = vmatpush1.msra.mxu0 0.0
    %936 = vmatprep.subr.mxu0 0.0
    %937 = vmatpush1.msra.mxu0 0.0
    %938 = vmatprep.subr.mxu0 0.0
    %939 = vmatpush1.msra.mxu0 0.0
    %940 = vmatprep.subr.mxu0 0.0
    %941 = vmatpush1.msra.mxu0 0.0
    %942 = vmatprep.subr.mxu0 0.0
    %943 = vmatpush1.msra.mxu0 0.0
    %944 = vmatprep.subr.mxu0 0.0
    %945 = vmatpush1.msra.mxu0 0.0
    %946 = vmatprep.subr.mxu0 0.0
    %947 = vmatpush1.msra.mxu0 0.0
    %948 = vmatprep.subr.mxu0 0.0
    %949 = vmatpush1.msra.mxu0 0.0
    %950 = vmatprep.mubr.f32.mxu0 0.0
    %951 = vmatmul.mubr.f32.gmra.mrb[0].mxu0 %v884
    %v952 = vpop.f32.mrb[0].mxu0
    %v953 = vadd.f32 0.0, %v952
    %v954 = vpop.f32.mrb[0].mxu0
    %955 = vdwg.mxu0
    %v957 = vrot.slane %v953, 2
    %v959 = vadd.f32 %v880, %v957
    %v960 = vld [vmem:[#allocation2 + $0x18] sm:$0x3]
    %v961 = vrot.slane %v869, 2
    %962 = vrot.lane.b32.xlu0 %v961, 32
    %v963 = vpop.permute.xlu0 %962
    %v964 = vsel %vm223, %v963, 0
    %966 = vmatprep.subr.mxu0 0.0
    %967 = vmatpush1.msra.mxu0 %v218
    %968 = vmatprep.subr.mxu0 0.0
    %969 = vmatpush1.msra.mxu0 %v219
    %970 = vmatprep.subr.mxu0 0.0
    %971 = vmatpush1.msra.mxu0 %v220
    %972 = vmatprep.subr.mxu0 0.0
    %973 = vmatpush1.msra.mxu0 %v221
    %974 = vmatprep.subr.mxu0 0.0
    %975 = vmatpush1.msra.mxu0 0.0
    %976 = vmatprep.subr.mxu0 0.0
    %977 = vmatpush1.msra.mxu0 0.0
    %978 = vmatprep.subr.mxu0 0.0
    %979 = vmatpush1.msra.mxu0 0.0
    %980 = vmatprep.subr.mxu0 0.0
    %981 = vmatpush1.msra.mxu0 0.0
    %982 = vmatprep.subr.mxu0 0.0
    %983 = vmatpush1.msra.mxu0 0.0
    %984 = vmatprep.subr.mxu0 0.0
    %985 = vmatpush1.msra.mxu0 0.0
    %986 = vmatprep.subr.mxu0 0.0
    %987 = vmatpush1.msra.mxu0 0.0
    %988 = vmatprep.subr.mxu0 0.0
    %989 = vmatpush1.msra.mxu0 0.0
    %990 = vmatprep.subr.mxu0 0.0
    %991 = vmatpush1.msra.mxu0 0.0
    %992 = vmatprep.subr.mxu0 0.0
    %993 = vmatpush1.msra.mxu0 0.0
    %994 = vmatprep.subr.mxu0 0.0
    %995 = vmatpush1.msra.mxu0 0.0
    %996 = vmatprep.subr.mxu0 0.0
    %997 = vmatpush1.msra.mxu0 0.0
    %998 = vmatprep.subr.mxu0 0.0
    %999 = vmatpush1.msra.mxu0 0.0
    %1000 = vmatprep.subr.mxu0 0.0
    %1001 = vmatpush1.msra.mxu0 0.0
    %1002 = vmatprep.subr.mxu0 0.0
    %1003 = vmatpush1.msra.mxu0 0.0
    %1004 = vmatprep.subr.mxu0 0.0
    %1005 = vmatpush1.msra.mxu0 0.0
    %1006 = vmatprep.subr.mxu0 0.0
    %1007 = vmatpush1.msra.mxu0 0.0
    %1008 = vmatprep.subr.mxu0 0.0
    %1009 = vmatpush1.msra.mxu0 0.0
    %1010 = vmatprep.subr.mxu0 0.0
    %1011 = vmatpush1.msra.mxu0 0.0
    %1012 = vmatprep.subr.mxu0 0.0
    %1013 = vmatpush1.msra.mxu0 0.0
    %1014 = vmatprep.subr.mxu0 0.0
    %1015 = vmatpush1.msra.mxu0 0.0
    %1016 = vmatprep.subr.mxu0 0.0
    %1017 = vmatpush1.msra.mxu0 0.0
    %1018 = vmatprep.subr.mxu0 0.0
    %1019 = vmatpush1.msra.mxu0 0.0
    %1020 = vmatprep.subr.mxu0 0.0
    %1021 = vmatpush1.msra.mxu0 0.0
    %1022 = vmatprep.subr.mxu0 0.0
    %1023 = vmatpush1.msra.mxu0 0.0
    %1024 = vmatprep.subr.mxu0 0.0
    %1025 = vmatpush1.msra.mxu0 0.0
    %1026 = vmatprep.subr.mxu0 0.0
    %1027 = vmatpush1.msra.mxu0 0.0
    %1028 = vmatprep.subr.mxu0 0.0
    %1029 = vmatpush1.msra.mxu0 0.0
    %1030 = vmatprep.mubr.f32.mxu0 0.0
    %1031 = vmatmul.mubr.f32.gmra.mrb[0].mxu0 %v964
    %v1032 = vpop.f32.mrb[0].mxu0
    %v1033 = vadd.f32 0.0, %v1032
    %v1034 = vpop.f32.mrb[0].mxu0
    %1035 = vdwg.mxu0
    %v1036 = vadd.f32 %v960, %v1033
    %v1037 = vxor.u32 %v959, 2147483648
    %v1038 = vmul.f32 %v1037, 1.442695
    %v1039 = vpow.pop %v1038
    %v1040 = vadd.f32 %v1039, 1.0
    %v1041 = vrcp.pop %v1040
    %v1042 = vmul.f32 1.0, %v1041
    %v1043 = vtanh.pop %v959
    %v1045 = vrot.slane %v836, 6
    %v1047 = vmul.f32 %v1042, %v1045
    %1049 = vrot.lane.b32.xlu0 %v1043, 64
    %v1050 = vpop.permute.xlu0 %1049
    %v1052 = vmul.f32 %v1042, %v1050
    %1054 = vrot.lane.b32.xlu0 %v1052, 32
    %v1055 = vpop.permute.xlu0 %1054
    %v1057 = vadd.f32 %v1047, %v1055
    %v1058 = vtanh.pop %v1057
    %1060 = vrot.lane.b32.xlu0 %v1058, 64
    %v1061 = vpop.permute.xlu0 %1060
    %v1063 = vmul.f32 %v1042, %v1061
    %v1064 = vxor.u32 %v1036, 2147483648
    %v1065 = vmul.f32 %v1064, 1.442695
    %v1066 = vpow.pop %v1065
    %v1067 = vadd.f32 %v1066, 1.0
    %v1068 = vrcp.pop %v1067
    %v1069 = vmul.f32 1.0, %v1068
    %v1070 = vtanh.pop %v1036
    %v1072 = vrot.slane %v863, 2
    %v1074 = vmul.f32 %v1069, %v1072
    %1076 = vrot.lane.b32.xlu0 %v1070, 64
    %v1077 = vpop.permute.xlu0 %1076
    %v1079 = vmul.f32 %v1069, %v1077
    %1081 = vrot.lane.b32.xlu0 %v1079, 32
    %v1082 = vpop.permute.xlu0 %1081
    %v1084 = vadd.f32 %v1074, %v1082
    %v1085 = vtanh.pop %v1084
    %1087 = vrot.lane.b32.xlu0 %v1085, 64
    %v1088 = vpop.permute.xlu0 %1087
    %v1090 = vmul.f32 %v1069, %v1088
    %1092 = vrot.lane.b32.xlu0 %v1063, 32
    %v1093 = vpop.permute.xlu0 %1092
    %1095 = vst.msk [vmem:[#allocation11] sm:$0xc0] %vm431, %v1093
    %1097 = vrot.lane.b32.xlu0 %v1090, 32
    %v1098 = vpop.permute.xlu0 %1097
    %1100 = vst.msk [vmem:[#allocation12 + $0x8] sm:$0x3] %vm425, %v1098
    %v1101 = vld [vmem:[#allocation2 + $0x10] sm:$0x3]
    %v1102 = vrot.slane %v1063, 6
    %1103 = vrot.lane.b32.xlu0 %v1102, 32
    %v1104 = vpop.permute.xlu0 %1103
    %v1105 = vsel %vm223, %v1104, 0
    %1107 = vmatprep.subr.mxu0 0.0
    %1108 = vmatpush1.msra.mxu0 %v214
    %1109 = vmatprep.subr.mxu0 0.0
    %1110 = vmatpush1.msra.mxu0 %v215
    %1111 = vmatprep.subr.mxu0 0.0
    %1112 = vmatpush1.msra.mxu0 %v216
    %1113 = vmatprep.subr.mxu0 0.0
    %1114 = vmatpush1.msra.mxu0 %v217
    %1115 = vmatprep.subr.mxu0 0.0
    %1116 = vmatpush1.msra.mxu0 0.0
    %1117 = vmatprep.subr.mxu0 0.0
    %1118 = vmatpush1.msra.mxu0 0.0
    %1119 = vmatprep.subr.mxu0 0.0
    %1120 = vmatpush1.msra.mxu0 0.0
    %1121 = vmatprep.subr.mxu0 0.0
    %1122 = vmatpush1.msra.mxu0 0.0
    %1123 = vmatprep.subr.mxu0 0.0
    %1124 = vmatpush1.msra.mxu0 0.0
    %1125 = vmatprep.subr.mxu0 0.0
    %1126 = vmatpush1.msra.mxu0 0.0
    %1127 = vmatprep.subr.mxu0 0.0
    %1128 = vmatpush1.msra.mxu0 0.0
    %1129 = vmatprep.subr.mxu0 0.0
    %1130 = vmatpush1.msra.mxu0 0.0
    %1131 = vmatprep.subr.mxu0 0.0
    %1132 = vmatpush1.msra.mxu0 0.0
    %1133 = vmatprep.subr.mxu0 0.0
    %1134 = vmatpush1.msra.mxu0 0.0
    %1135 = vmatprep.subr.mxu0 0.0
    %1136 = vmatpush1.msra.mxu0 0.0
    %1137 = vmatprep.subr.mxu0 0.0
    %1138 = vmatpush1.msra.mxu0 0.0
    %1139 = vmatprep.subr.mxu0 0.0
    %1140 = vmatpush1.msra.mxu0 0.0
    %1141 = vmatprep.subr.mxu0 0.0
    %1142 = vmatpush1.msra.mxu0 0.0
    %1143 = vmatprep.subr.mxu0 0.0
    %1144 = vmatpush1.msra.mxu0 0.0
    %1145 = vmatprep.subr.mxu0 0.0
    %1146 = vmatpush1.msra.mxu0 0.0
    %1147 = vmatprep.subr.mxu0 0.0
    %1148 = vmatpush1.msra.mxu0 0.0
    %1149 = vmatprep.subr.mxu0 0.0
    %1150 = vmatpush1.msra.mxu0 0.0
    %1151 = vmatprep.subr.mxu0 0.0
    %1152 = vmatpush1.msra.mxu0 0.0
    %1153 = vmatprep.subr.mxu0 0.0
    %1154 = vmatpush1.msra.mxu0 0.0
    %1155 = vmatprep.subr.mxu0 0.0
    %1156 = vmatpush1.msra.mxu0 0.0
    %1157 = vmatprep.subr.mxu0 0.0
    %1158 = vmatpush1.msra.mxu0 0.0
    %1159 = vmatprep.subr.mxu0 0.0
    %1160 = vmatpush1.msra.mxu0 0.0
    %1161 = vmatprep.subr.mxu0 0.0
    %1162 = vmatpush1.msra.mxu0 0.0
    %1163 = vmatprep.subr.mxu0 0.0
    %1164 = vmatpush1.msra.mxu0 0.0
    %1165 = vmatprep.subr.mxu0 0.0
    %1166 = vmatpush1.msra.mxu0 0.0
    %1167 = vmatprep.subr.mxu0 0.0
    %1168 = vmatpush1.msra.mxu0 0.0
    %1169 = vmatprep.subr.mxu0 0.0
    %1170 = vmatpush1.msra.mxu0 0.0
    %1171 = vmatprep.mubr.f32.mxu0 0.0
    %1172 = vmatmul.mubr.f32.gmra.mrb[0].mxu0 %v1105
    %v1173 = vpop.f32.mrb[0].mxu0
    %v1174 = vadd.f32 0.0, %v1173
    %v1175 = vpop.f32.mrb[0].mxu0
    %1176 = vdwg.mxu0
    %v1177 = vadd.f32 %v1101, %v1174
    %v1178 = vld [vmem:[#allocation2 + $0x8] sm:$0xc0]
    %v1179 = vsel %vm223, %v1098, 0
    %1181 = vmatprep.subr.mxu0 0.0
    %1182 = vmatpush1.msra.mxu0 %v218
    %1183 = vmatprep.subr.mxu0 0.0
    %1184 = vmatpush1.msra.mxu0 %v219
    %1185 = vmatprep.subr.mxu0 0.0
    %1186 = vmatpush1.msra.mxu0 %v220
    %1187 = vmatprep.subr.mxu0 0.0
    %1188 = vmatpush1.msra.mxu0 %v221
    %1189 = vmatprep.subr.mxu0 0.0
    %1190 = vmatpush1.msra.mxu0 0.0
    %1191 = vmatprep.subr.mxu0 0.0
    %1192 = vmatpush1.msra.mxu0 0.0
    %1193 = vmatprep.subr.mxu0 0.0
    %1194 = vmatpush1.msra.mxu0 0.0
    %1195 = vmatprep.subr.mxu0 0.0
    %1196 = vmatpush1.msra.mxu0 0.0
    %1197 = vmatprep.subr.mxu0 0.0
    %1198 = vmatpush1.msra.mxu0 0.0
    %1199 = vmatprep.subr.mxu0 0.0
    %1200 = vmatpush1.msra.mxu0 0.0
    %1201 = vmatprep.subr.mxu0 0.0
    %1202 = vmatpush1.msra.mxu0 0.0
    %1203 = vmatprep.subr.mxu0 0.0
    %1204 = vmatpush1.msra.mxu0 0.0
    %1205 = vmatprep.subr.mxu0 0.0
    %1206 = vmatpush1.msra.mxu0 0.0
    %1207 = vmatprep.subr.mxu0 0.0
    %1208 = vmatpush1.msra.mxu0 0.0
    %1209 = vmatprep.subr.mxu0 0.0
    %1210 = vmatpush1.msra.mxu0 0.0
    %1211 = vmatprep.subr.mxu0 0.0
    %1212 = vmatpush1.msra.mxu0 0.0
    %1213 = vmatprep.subr.mxu0 0.0
    %1214 = vmatpush1.msra.mxu0 0.0
    %1215 = vmatprep.subr.mxu0 0.0
    %1216 = vmatpush1.msra.mxu0 0.0
    %1217 = vmatprep.subr.mxu0 0.0
    %1218 = vmatpush1.msra.mxu0 0.0
    %1219 = vmatprep.subr.mxu0 0.0
    %1220 = vmatpush1.msra.mxu0 0.0
    %1221 = vmatprep.subr.mxu0 0.0
    %1222 = vmatpush1.msra.mxu0 0.0
    %1223 = vmatprep.subr.mxu0 0.0
    %1224 = vmatpush1.msra.mxu0 0.0
    %1225 = vmatprep.subr.mxu0 0.0
    %1226 = vmatpush1.msra.mxu0 0.0
    %1227 = vmatprep.subr.mxu0 0.0
    %1228 = vmatpush1.msra.mxu0 0.0
    %1229 = vmatprep.subr.mxu0 0.0
    %1230 = vmatpush1.msra.mxu0 0.0
    %1231 = vmatprep.subr.mxu0 0.0
    %1232 = vmatpush1.msra.mxu0 0.0
    %1233 = vmatprep.subr.mxu0 0.0
    %1234 = vmatpush1.msra.mxu0 0.0
    %1235 = vmatprep.subr.mxu0 0.0
    %1236 = vmatpush1.msra.mxu0 0.0
    %1237 = vmatprep.subr.mxu0 0.0
    %1238 = vmatpush1.msra.mxu0 0.0
    %1239 = vmatprep.subr.mxu0 0.0
    %1240 = vmatpush1.msra.mxu0 0.0
    %1241 = vmatprep.subr.mxu0 0.0
    %1242 = vmatpush1.msra.mxu0 0.0
    %1243 = vmatprep.subr.mxu0 0.0
    %1244 = vmatpush1.msra.mxu0 0.0
    %1245 = vmatprep.mubr.f32.mxu0 0.0
    %1246 = vmatmul.mubr.f32.gmra.mrb[0].mxu0 %v1179
    %v1247 = vpop.f32.mrb[0].mxu0
    %v1248 = vadd.f32 0.0, %v1247
    %v1249 = vpop.f32.mrb[0].mxu0
    %1250 = vdwg.mxu0
    %v1252 = vrot.slane %v1248, 2
    %v1254 = vadd.f32 %v1178, %v1252
    %v1255 = vxor.u32 %v1177, 2147483648
    %v1256 = vmul.f32 %v1255, 1.442695
    %v1257 = vpow.pop %v1256
    %v1258 = vadd.f32 %v1257, 1.0
    %v1259 = vrcp.pop %v1258
    %v1260 = vmul.f32 1.0, %v1259
    %v1261 = vtanh.pop %v1177
    %v1263 = vrot.slane %v1057, 6
    %v1265 = vmul.f32 %v1260, %v1263
    %1267 = vrot.lane.b32.xlu0 %v1261, 64
    %v1268 = vpop.permute.xlu0 %1267
    %v1270 = vmul.f32 %v1260, %v1268
    %1272 = vrot.lane.b32.xlu0 %v1270, 32
    %v1273 = vpop.permute.xlu0 %1272
    %v1275 = vadd.f32 %v1265, %v1273
    %v1276 = vtanh.pop %v1275
    %1278 = vrot.lane.b32.xlu0 %v1276, 64
    %v1279 = vpop.permute.xlu0 %1278
    %v1281 = vmul.f32 %v1260, %v1279
    %v1282 = vxor.u32 %v1254, 2147483648
    %v1283 = vmul.f32 %v1282, 1.442695
    %v1284 = vpow.pop %v1283
    %v1285 = vadd.f32 %v1284, 1.0
    %v1286 = vrcp.pop %v1285
    %v1287 = vmul.f32 1.0, %v1286
    %v1288 = vtanh.pop %v1254
    %v1290 = vrot.slane %v1084, 2
    %v1292 = vmul.f32 %v1287, %v1290
    %1294 = vrot.lane.b32.xlu0 %v1288, 64
    %v1295 = vpop.permute.xlu0 %1294
    %v1297 = vmul.f32 %v1287, %v1295
    %1299 = vrot.lane.b32.xlu0 %v1297, 32
    %v1300 = vpop.permute.xlu0 %1299
    %v1302 = vadd.f32 %v1292, %v1300
    %v1303 = vtanh.pop %v1302
    %1305 = vrot.lane.b32.xlu0 %v1303, 64
    %v1306 = vpop.permute.xlu0 %1305
    %v1308 = vmul.f32 %v1287, %v1306
    %1310 = vrot.lane.b32.xlu0 %v1281, 32
    %v1311 = vpop.permute.xlu0 %1310
    %1313 = vst.msk [vmem:[#allocation11 + $0x8] sm:$0x3] %vm425, %v1311
    %1315 = vrot.lane.b32.xlu0 %v1308, 32
    %v1316 = vpop.permute.xlu0 %1315
    %1318 = vst.msk [vmem:[#allocation12] sm:$0xc0] %vm431, %v1316
    %v1319 = vld [vmem:[#allocation2 + $0x10] sm:$0xc]
    %v1320 = vsel %vm223, %v1311, 0
    %1322 = vmatprep.subr.mxu0 0.0
    %1323 = vmatpush1.msra.mxu0 %v214
    %1324 = vmatprep.subr.mxu0 0.0
    %1325 = vmatpush1.msra.mxu0 %v215
    %1326 = vmatprep.subr.mxu0 0.0
    %1327 = vmatpush1.msra.mxu0 %v216
    %1328 = vmatprep.subr.mxu0 0.0
    %1329 = vmatpush1.msra.mxu0 %v217
    %1330 = vmatprep.subr.mxu0 0.0
    %1331 = vmatpush1.msra.mxu0 0.0
    %1332 = vmatprep.subr.mxu0 0.0
    %1333 = vmatpush1.msra.mxu0 0.0
    %1334 = vmatprep.subr.mxu0 0.0
    %1335 = vmatpush1.msra.mxu0 0.0
    %1336 = vmatprep.subr.mxu0 0.0
    %1337 = vmatpush1.msra.mxu0 0.0
    %1338 = vmatprep.subr.mxu0 0.0
    %1339 = vmatpush1.msra.mxu0 0.0
    %1340 = vmatprep.subr.mxu0 0.0
    %1341 = vmatpush1.msra.mxu0 0.0
    %1342 = vmatprep.subr.mxu0 0.0
    %1343 = vmatpush1.msra.mxu0 0.0
    %1344 = vmatprep.subr.mxu0 0.0
    %1345 = vmatpush1.msra.mxu0 0.0
    %1346 = vmatprep.subr.mxu0 0.0
    %1347 = vmatpush1.msra.mxu0 0.0
    %1348 = vmatprep.subr.mxu0 0.0
    %1349 = vmatpush1.msra.mxu0 0.0
    %1350 = vmatprep.subr.mxu0 0.0
    %1351 = vmatpush1.msra.mxu0 0.0
    %1352 = vmatprep.subr.mxu0 0.0
    %1353 = vmatpush1.msra.mxu0 0.0
    %1354 = vmatprep.subr.mxu0 0.0
    %1355 = vmatpush1.msra.mxu0 0.0
    %1356 = vmatprep.subr.mxu0 0.0
    %1357 = vmatpush1.msra.mxu0 0.0
    %1358 = vmatprep.subr.mxu0 0.0
    %1359 = vmatpush1.msra.mxu0 0.0
    %1360 = vmatprep.subr.mxu0 0.0
    %1361 = vmatpush1.msra.mxu0 0.0
    %1362 = vmatprep.subr.mxu0 0.0
    %1363 = vmatpush1.msra.mxu0 0.0
    %1364 = vmatprep.subr.mxu0 0.0
    %1365 = vmatpush1.msra.mxu0 0.0
    %1366 = vmatprep.subr.mxu0 0.0
    %1367 = vmatpush1.msra.mxu0 0.0
    %1368 = vmatprep.subr.mxu0 0.0
    %1369 = vmatpush1.msra.mxu0 0.0
    %1370 = vmatprep.subr.mxu0 0.0
    %1371 = vmatpush1.msra.mxu0 0.0
    %1372 = vmatprep.subr.mxu0 0.0
    %1373 = vmatpush1.msra.mxu0 0.0
    %1374 = vmatprep.subr.mxu0 0.0
    %1375 = vmatpush1.msra.mxu0 0.0
    %1376 = vmatprep.subr.mxu0 0.0
    %1377 = vmatpush1.msra.mxu0 0.0
    %1378 = vmatprep.subr.mxu0 0.0
    %1379 = vmatpush1.msra.mxu0 0.0
    %1380 = vmatprep.subr.mxu0 0.0
    %1381 = vmatpush1.msra.mxu0 0.0
    %1382 = vmatprep.subr.mxu0 0.0
    %1383 = vmatpush1.msra.mxu0 0.0
    %1384 = vmatprep.subr.mxu0 0.0
    %1385 = vmatpush1.msra.mxu0 0.0
    %1386 = vmatprep.mubr.f32.mxu0 0.0
    %1387 = vmatmul.mubr.f32.gmra.mrb[0].mxu0 %v1320
    %v1388 = vpop.f32.mrb[0].mxu0
    %v1389 = vadd.f32 0.0, %v1388
    %v1390 = vpop.f32.mrb[0].mxu0
    %1391 = vdwg.mxu0
    %v1393 = vrot.slane %v1389, 6
    %v1395 = vadd.f32 %v1319, %v1393
    %v1396 = vld [vmem:[#allocation2 + $0x8] sm:$0x30]
    %v1397 = vrot.slane %v1308, 6
    %1398 = vrot.lane.b32.xlu0 %v1397, 32
    %v1399 = vpop.permute.xlu0 %1398
    %v1400 = vsel %vm223, %v1399, 0
    %1402 = vmatprep.subr.mxu0 0.0
    %1403 = vmatpush1.msra.mxu0 %v218
    %1404 = vmatprep.subr.mxu0 0.0
    %1405 = vmatpush1.msra.mxu0 %v219
    %1406 = vmatprep.subr.mxu0 0.0
    %1407 = vmatpush1.msra.mxu0 %v220
    %1408 = vmatprep.subr.mxu0 0.0
    %1409 = vmatpush1.msra.mxu0 %v221
    %1410 = vmatprep.subr.mxu0 0.0
    %1411 = vmatpush1.msra.mxu0 0.0
    %1412 = vmatprep.subr.mxu0 0.0
    %1413 = vmatpush1.msra.mxu0 0.0
    %1414 = vmatprep.subr.mxu0 0.0
    %1415 = vmatpush1.msra.mxu0 0.0
    %1416 = vmatprep.subr.mxu0 0.0
    %1417 = vmatpush1.msra.mxu0 0.0
    %1418 = vmatprep.subr.mxu0 0.0
    %1419 = vmatpush1.msra.mxu0 0.0
    %1420 = vmatprep.subr.mxu0 0.0
    %1421 = vmatpush1.msra.mxu0 0.0
    %1422 = vmatprep.subr.mxu0 0.0
    %1423 = vmatpush1.msra.mxu0 0.0
    %1424 = vmatprep.subr.mxu0 0.0
    %1425 = vmatpush1.msra.mxu0 0.0
    %1426 = vmatprep.subr.mxu0 0.0
    %1427 = vmatpush1.msra.mxu0 0.0
    %1428 = vmatprep.subr.mxu0 0.0
    %1429 = vmatpush1.msra.mxu0 0.0
    %1430 = vmatprep.subr.mxu0 0.0
    %1431 = vmatpush1.msra.mxu0 0.0
    %1432 = vmatprep.subr.mxu0 0.0
    %1433 = vmatpush1.msra.mxu0 0.0
    %1434 = vmatprep.subr.mxu0 0.0
    %1435 = vmatpush1.msra.mxu0 0.0
    %1436 = vmatprep.subr.mxu0 0.0
    %1437 = vmatpush1.msra.mxu0 0.0
    %1438 = vmatprep.subr.mxu0 0.0
    %1439 = vmatpush1.msra.mxu0 0.0
    %1440 = vmatprep.subr.mxu0 0.0
    %1441 = vmatpush1.msra.mxu0 0.0
    %1442 = vmatprep.subr.mxu0 0.0
    %1443 = vmatpush1.msra.mxu0 0.0
    %1444 = vmatprep.subr.mxu0 0.0
    %1445 = vmatpush1.msra.mxu0 0.0
    %1446 = vmatprep.subr.mxu0 0.0
    %1447 = vmatpush1.msra.mxu0 0.0
    %1448 = vmatprep.subr.mxu0 0.0
    %1449 = vmatpush1.msra.mxu0 0.0
    %1450 = vmatprep.subr.mxu0 0.0
    %1451 = vmatpush1.msra.mxu0 0.0
    %1452 = vmatprep.subr.mxu0 0.0
    %1453 = vmatpush1.msra.mxu0 0.0
    %1454 = vmatprep.subr.mxu0 0.0
    %1455 = vmatpush1.msra.mxu0 0.0
    %1456 = vmatprep.subr.mxu0 0.0
    %1457 = vmatpush1.msra.mxu0 0.0
    %1458 = vmatprep.subr.mxu0 0.0
    %1459 = vmatpush1.msra.mxu0 0.0
    %1460 = vmatprep.subr.mxu0 0.0
    %1461 = vmatpush1.msra.mxu0 0.0
    %1462 = vmatprep.subr.mxu0 0.0
    %1463 = vmatpush1.msra.mxu0 0.0
    %1464 = vmatprep.subr.mxu0 0.0
    %1465 = vmatpush1.msra.mxu0 0.0
    %1466 = vmatprep.mubr.f32.mxu0 0.0
    %1467 = vmatmul.mubr.f32.gmra.mrb[0].mxu0 %v1400
    %v1468 = vpop.f32.mrb[0].mxu0
    %v1469 = vadd.f32 0.0, %v1468
    %v1470 = vpop.f32.mrb[0].mxu0
    %1471 = vdwg.mxu0
    %v1473 = vrot.slane %v1469, 4
    %v1475 = vadd.f32 %v1396, %v1473
    %v1476 = vxor.u32 %v1395, 2147483648
    %v1477 = vmul.f32 %v1476, 1.442695
    %v1478 = vpow.pop %v1477
    %v1479 = vadd.f32 %v1478, 1.0
    %v1480 = vrcp.pop %v1479
    %v1481 = vmul.f32 1.0, %v1480
    %v1482 = vtanh.pop %v1395
    %v1484 = vrot.slane %v1275, 6
    %v1486 = vmul.f32 %v1481, %v1484
    %1488 = vrot.lane.b32.xlu0 %v1482, 64
    %v1489 = vpop.permute.xlu0 %1488
    %v1491 = vmul.f32 %v1481, %v1489
    %1493 = vrot.lane.b32.xlu0 %v1491, 32
    %v1494 = vpop.permute.xlu0 %1493
    %v1496 = vadd.f32 %v1486, %v1494
    %v1497 = vtanh.pop %v1496
    %1499 = vrot.lane.b32.xlu0 %v1497, 64
    %v1500 = vpop.permute.xlu0 %1499
    %v1502 = vmul.f32 %v1481, %v1500
    %v1503 = vxor.u32 %v1475, 2147483648
    %v1504 = vmul.f32 %v1503, 1.442695
    %v1505 = vpow.pop %v1504
    %v1506 = vadd.f32 %v1505, 1.0
    %v1507 = vrcp.pop %v1506
    %v1508 = vmul.f32 1.0, %v1507
    %v1509 = vtanh.pop %v1475
    %v1511 = vrot.slane %v1302, 2
    %v1513 = vmul.f32 %v1508, %v1511
    %1515 = vrot.lane.b32.xlu0 %v1509, 64
    %v1516 = vpop.permute.xlu0 %1515
    %v1518 = vmul.f32 %v1508, %v1516
    %1520 = vrot.lane.b32.xlu0 %v1518, 32
    %v1521 = vpop.permute.xlu0 %1520
    %v1523 = vadd.f32 %v1513, %v1521
    %v1524 = vtanh.pop %v1523
    %1526 = vrot.lane.b32.xlu0 %v1524, 64
    %v1527 = vpop.permute.xlu0 %1526
    %v1529 = vmul.f32 %v1508, %v1527
    %1531 = vrot.lane.b32.xlu0 %v1502, 32
    %v1532 = vpop.permute.xlu0 %1531
    %1534 = vst.msk [vmem:[#allocation11 + $0x8] sm:$0xc] %vm648, %v1532
    %1536 = vrot.lane.b32.xlu0 %v1529, 32
    %v1537 = vpop.permute.xlu0 %1536
    %1539 = vst.msk [vmem:[#allocation12] sm:$0x30] %vm654, %v1537
    %v1540 = vld [vmem:[#allocation2 + $0x10] sm:$0x30]
    %v1541 = vrot.slane %v1502, 2
    %1542 = vrot.lane.b32.xlu0 %v1541, 32
    %v1543 = vpop.permute.xlu0 %1542
    %v1544 = vsel %vm223, %v1543, 0
    %1546 = vmatprep.subr.mxu0 0.0
    %1547 = vmatpush1.msra.mxu0 %v214
    %1548 = vmatprep.subr.mxu0 0.0
    %1549 = vmatpush1.msra.mxu0 %v215
    %1550 = vmatprep.subr.mxu0 0.0
    %1551 = vmatpush1.msra.mxu0 %v216
    %1552 = vmatprep.subr.mxu0 0.0
    %1553 = vmatpush1.msra.mxu0 %v217
    %1554 = vmatprep.subr.mxu0 0.0
    %1555 = vmatpush1.msra.mxu0 0.0
    %1556 = vmatprep.subr.mxu0 0.0
    %1557 = vmatpush1.msra.mxu0 0.0
    %1558 = vmatprep.subr.mxu0 0.0
    %1559 = vmatpush1.msra.mxu0 0.0
    %1560 = vmatprep.subr.mxu0 0.0
    %1561 = vmatpush1.msra.mxu0 0.0
    %1562 = vmatprep.subr.mxu0 0.0
    %1563 = vmatpush1.msra.mxu0 0.0
    %1564 = vmatprep.subr.mxu0 0.0
    %1565 = vmatpush1.msra.mxu0 0.0
    %1566 = vmatprep.subr.mxu0 0.0
    %1567 = vmatpush1.msra.mxu0 0.0
    %1568 = vmatprep.subr.mxu0 0.0
    %1569 = vmatpush1.msra.mxu0 0.0
    %1570 = vmatprep.subr.mxu0 0.0
    %1571 = vmatpush1.msra.mxu0 0.0
    %1572 = vmatprep.subr.mxu0 0.0
    %1573 = vmatpush1.msra.mxu0 0.0
    %1574 = vmatprep.subr.mxu0 0.0
    %1575 = vmatpush1.msra.mxu0 0.0
    %1576 = vmatprep.subr.mxu0 0.0
    %1577 = vmatpush1.msra.mxu0 0.0
    %1578 = vmatprep.subr.mxu0 0.0
    %1579 = vmatpush1.msra.mxu0 0.0
    %1580 = vmatprep.subr.mxu0 0.0
    %1581 = vmatpush1.msra.mxu0 0.0
    %1582 = vmatprep.subr.mxu0 0.0
    %1583 = vmatpush1.msra.mxu0 0.0
    %1584 = vmatprep.subr.mxu0 0.0
    %1585 = vmatpush1.msra.mxu0 0.0
    %1586 = vmatprep.subr.mxu0 0.0
    %1587 = vmatpush1.msra.mxu0 0.0
    %1588 = vmatprep.subr.mxu0 0.0
    %1589 = vmatpush1.msra.mxu0 0.0
    %1590 = vmatprep.subr.mxu0 0.0
    %1591 = vmatpush1.msra.mxu0 0.0
    %1592 = vmatprep.subr.mxu0 0.0
    %1593 = vmatpush1.msra.mxu0 0.0
    %1594 = vmatprep.subr.mxu0 0.0
    %1595 = vmatpush1.msra.mxu0 0.0
    %1596 = vmatprep.subr.mxu0 0.0
    %1597 = vmatpush1.msra.mxu0 0.0
    %1598 = vmatprep.subr.mxu0 0.0
    %1599 = vmatpush1.msra.mxu0 0.0
    %1600 = vmatprep.subr.mxu0 0.0
    %1601 = vmatpush1.msra.mxu0 0.0
    %1602 = vmatprep.subr.mxu0 0.0
    %1603 = vmatpush1.msra.mxu0 0.0
    %1604 = vmatprep.subr.mxu0 0.0
    %1605 = vmatpush1.msra.mxu0 0.0
    %1606 = vmatprep.subr.mxu0 0.0
    %1607 = vmatpush1.msra.mxu0 0.0
    %1608 = vmatprep.subr.mxu0 0.0
    %1609 = vmatpush1.msra.mxu0 0.0
    %1610 = vmatprep.mubr.f32.mxu0 0.0
    %1611 = vmatmul.mubr.f32.gmra.mrb[0].mxu0 %v1544
    %v1612 = vpop.f32.mrb[0].mxu0
    %v1613 = vadd.f32 0.0, %v1612
    %v1614 = vpop.f32.mrb[0].mxu0
    %1615 = vdwg.mxu0
    %v1617 = vrot.slane %v1613, 4
    %v1619 = vadd.f32 %v1540, %v1617
    %v1620 = vld [vmem:[#allocation2 + $0x8] sm:$0xc]
    %v1621 = vrot.slane %v1529, 4
    %1622 = vrot.lane.b32.xlu0 %v1621, 32
    %v1623 = vpop.permute.xlu0 %1622
    %v1624 = vsel %vm223, %v1623, 0
    %1626 = vmatprep.subr.mxu0 0.0
    %1627 = vmatpush1.msra.mxu0 %v218
    %1628 = vmatprep.subr.mxu0 0.0
    %1629 = vmatpush1.msra.mxu0 %v219
    %1630 = vmatprep.subr.mxu0 0.0
    %1631 = vmatpush1.msra.mxu0 %v220
    %1632 = vmatprep.subr.mxu0 0.0
    %1633 = vmatpush1.msra.mxu0 %v221
    %1634 = vmatprep.subr.mxu0 0.0
    %1635 = vmatpush1.msra.mxu0 0.0
    %1636 = vmatprep.subr.mxu0 0.0
    %1637 = vmatpush1.msra.mxu0 0.0
    %1638 = vmatprep.subr.mxu0 0.0
    %1639 = vmatpush1.msra.mxu0 0.0
    %1640 = vmatprep.subr.mxu0 0.0
    %1641 = vmatpush1.msra.mxu0 0.0
    %1642 = vmatprep.subr.mxu0 0.0
    %1643 = vmatpush1.msra.mxu0 0.0
    %1644 = vmatprep.subr.mxu0 0.0
    %1645 = vmatpush1.msra.mxu0 0.0
    %1646 = vmatprep.subr.mxu0 0.0
    %1647 = vmatpush1.msra.mxu0 0.0
    %1648 = vmatprep.subr.mxu0 0.0
    %1649 = vmatpush1.msra.mxu0 0.0
    %1650 = vmatprep.subr.mxu0 0.0
    %1651 = vmatpush1.msra.mxu0 0.0
    %1652 = vmatprep.subr.mxu0 0.0
    %1653 = vmatpush1.msra.mxu0 0.0
    %1654 = vmatprep.subr.mxu0 0.0
    %1655 = vmatpush1.msra.mxu0 0.0
    %1656 = vmatprep.subr.mxu0 0.0
    %1657 = vmatpush1.msra.mxu0 0.0
    %1658 = vmatprep.subr.mxu0 0.0
    %1659 = vmatpush1.msra.mxu0 0.0
    %1660 = vmatprep.subr.mxu0 0.0
    %1661 = vmatpush1.msra.mxu0 0.0
    %1662 = vmatprep.subr.mxu0 0.0
    %1663 = vmatpush1.msra.mxu0 0.0
    %1664 = vmatprep.subr.mxu0 0.0
    %1665 = vmatpush1.msra.mxu0 0.0
    %1666 = vmatprep.subr.mxu0 0.0
    %1667 = vmatpush1.msra.mxu0 0.0
    %1668 = vmatprep.subr.mxu0 0.0
    %1669 = vmatpush1.msra.mxu0 0.0
    %1670 = vmatprep.subr.mxu0 0.0
    %1671 = vmatpush1.msra.mxu0 0.0
    %1672 = vmatprep.subr.mxu0 0.0
    %1673 = vmatpush1.msra.mxu0 0.0
    %1674 = vmatprep.subr.mxu0 0.0
    %1675 = vmatpush1.msra.mxu0 0.0
    %1676 = vmatprep.subr.mxu0 0.0
    %1677 = vmatpush1.msra.mxu0 0.0
    %1678 = vmatprep.subr.mxu0 0.0
    %1679 = vmatpush1.msra.mxu0 0.0
    %1680 = vmatprep.subr.mxu0 0.0
    %1681 = vmatpush1.msra.mxu0 0.0
    %1682 = vmatprep.subr.mxu0 0.0
    %1683 = vmatpush1.msra.mxu0 0.0
    %1684 = vmatprep.subr.mxu0 0.0
    %1685 = vmatpush1.msra.mxu0 0.0
    %1686 = vmatprep.subr.mxu0 0.0
    %1687 = vmatpush1.msra.mxu0 0.0
    %1688 = vmatprep.subr.mxu0 0.0
    %1689 = vmatpush1.msra.mxu0 0.0
    %1690 = vmatprep.mubr.f32.mxu0 0.0
    %1691 = vmatmul.mubr.f32.gmra.mrb[0].mxu0 %v1624
    %v1692 = vpop.f32.mrb[0].mxu0
    %v1693 = vadd.f32 0.0, %v1692
    %v1694 = vpop.f32.mrb[0].mxu0
    %1695 = vdwg.mxu0
    %v1697 = vrot.slane %v1693, 6
    %v1699 = vadd.f32 %v1620, %v1697
    %v1700 = vxor.u32 %v1619, 2147483648
    %v1701 = vmul.f32 %v1700, 1.442695
    %v1702 = vpow.pop %v1701
    %v1703 = vadd.f32 %v1702, 1.0
    %v1704 = vrcp.pop %v1703
    %v1705 = vmul.f32 1.0, %v1704
    %v1706 = vtanh.pop %v1619
    %v1708 = vrot.slane %v1496, 6
    %v1710 = vmul.f32 %v1705, %v1708
    %1712 = vrot.lane.b32.xlu0 %v1706, 64
    %v1713 = vpop.permute.xlu0 %1712
    %v1715 = vmul.f32 %v1705, %v1713
    %1717 = vrot.lane.b32.xlu0 %v1715, 32
    %v1718 = vpop.permute.xlu0 %1717
    %v1720 = vadd.f32 %v1710, %v1718
    %v1721 = vtanh.pop %v1720
    %1723 = vrot.lane.b32.xlu0 %v1721, 64
    %v1724 = vpop.permute.xlu0 %1723
    %v1726 = vmul.f32 %v1705, %v1724
    %v1727 = vxor.u32 %v1699, 2147483648
    %v1728 = vmul.f32 %v1727, 1.442695
    %v1729 = vpow.pop %v1728
    %v1730 = vadd.f32 %v1729, 1.0
    %v1731 = vrcp.pop %v1730
    %v1732 = vmul.f32 1.0, %v1731
    %v1733 = vtanh.pop %v1699
    %v1735 = vrot.slane %v1523, 2
    %v1737 = vmul.f32 %v1732, %v1735
    %1739 = vrot.lane.b32.xlu0 %v1733, 64
    %v1740 = vpop.permute.xlu0 %1739
    %v1742 = vmul.f32 %v1732, %v1740
    %1744 = vrot.lane.b32.xlu0 %v1742, 32
    %v1745 = vpop.permute.xlu0 %1744
    %v1747 = vadd.f32 %v1737, %v1745
    %v1748 = vtanh.pop %v1747
    %1750 = vrot.lane.b32.xlu0 %v1748, 64
    %v1751 = vpop.permute.xlu0 %1750
    %v1753 = vmul.f32 %v1732, %v1751
    %1755 = vrot.lane.b32.xlu0 %v1726, 32
    %v1756 = vpop.permute.xlu0 %1755
    %1758 = vst.msk [vmem:[#allocation11 + $0x8] sm:$0x30] %vm654, %v1756
    %1760 = vrot.lane.b32.xlu0 %v1753, 32
    %v1761 = vpop.permute.xlu0 %1760
    %1763 = vst.msk [vmem:[#allocation12] sm:$0xc] %vm648, %v1761
    %v1764 = vld [vmem:[#allocation2 + $0x10] sm:$0xc0]
    %v1765 = vrot.slane %v1726, 4
    %1766 = vrot.lane.b32.xlu0 %v1765, 32
    %v1767 = vpop.permute.xlu0 %1766
    %v1768 = vsel %vm223, %v1767, 0
    %1770 = vmatprep.subr.mxu0 0.0
    %1771 = vmatpush1.msra.mxu0 %v214
    %1772 = vmatprep.subr.mxu0 0.0
    %1773 = vmatpush1.msra.mxu0 %v215
    %1774 = vmatprep.subr.mxu0 0.0
    %1775 = vmatpush1.msra.mxu0 %v216
    %1776 = vmatprep.subr.mxu0 0.0
    %1777 = vmatpush1.msra.mxu0 %v217
    %1778 = vmatprep.subr.mxu0 0.0
    %1779 = vmatpush1.msra.mxu0 0.0
    %1780 = vmatprep.subr.mxu0 0.0
    %1781 = vmatpush1.msra.mxu0 0.0
    %1782 = vmatprep.subr.mxu0 0.0
    %1783 = vmatpush1.msra.mxu0 0.0
    %1784 = vmatprep.subr.mxu0 0.0
    %1785 = vmatpush1.msra.mxu0 0.0
    %1786 = vmatprep.subr.mxu0 0.0
    %1787 = vmatpush1.msra.mxu0 0.0
    %1788 = vmatprep.subr.mxu0 0.0
    %1789 = vmatpush1.msra.mxu0 0.0
    %1790 = vmatprep.subr.mxu0 0.0
    %1791 = vmatpush1.msra.mxu0 0.0
    %1792 = vmatprep.subr.mxu0 0.0
    %1793 = vmatpush1.msra.mxu0 0.0
    %1794 = vmatprep.subr.mxu0 0.0
    %1795 = vmatpush1.msra.mxu0 0.0
    %1796 = vmatprep.subr.mxu0 0.0
    %1797 = vmatpush1.msra.mxu0 0.0
    %1798 = vmatprep.subr.mxu0 0.0
    %1799 = vmatpush1.msra.mxu0 0.0
    %1800 = vmatprep.subr.mxu0 0.0
    %1801 = vmatpush1.msra.mxu0 0.0
    %1802 = vmatprep.subr.mxu0 0.0
    %1803 = vmatpush1.msra.mxu0 0.0
    %1804 = vmatprep.subr.mxu0 0.0
    %1805 = vmatpush1.msra.mxu0 0.0
    %1806 = vmatprep.subr.mxu0 0.0
    %1807 = vmatpush1.msra.mxu0 0.0
    %1808 = vmatprep.subr.mxu0 0.0
    %1809 = vmatpush1.msra.mxu0 0.0
    %1810 = vmatprep.subr.mxu0 0.0
    %1811 = vmatpush1.msra.mxu0 0.0
    %1812 = vmatprep.subr.mxu0 0.0
    %1813 = vmatpush1.msra.mxu0 0.0
    %1814 = vmatprep.subr.mxu0 0.0
    %1815 = vmatpush1.msra.mxu0 0.0
    %1816 = vmatprep.subr.mxu0 0.0
    %1817 = vmatpush1.msra.mxu0 0.0
    %1818 = vmatprep.subr.mxu0 0.0
    %1819 = vmatpush1.msra.mxu0 0.0
    %1820 = vmatprep.subr.mxu0 0.0
    %1821 = vmatpush1.msra.mxu0 0.0
    %1822 = vmatprep.subr.mxu0 0.0
    %1823 = vmatpush1.msra.mxu0 0.0
    %1824 = vmatprep.subr.mxu0 0.0
    %1825 = vmatpush1.msra.mxu0 0.0
    %1826 = vmatprep.subr.mxu0 0.0
    %1827 = vmatpush1.msra.mxu0 0.0
    %1828 = vmatprep.subr.mxu0 0.0
    %1829 = vmatpush1.msra.mxu0 0.0
    %1830 = vmatprep.subr.mxu0 0.0
    %1831 = vmatpush1.msra.mxu0 0.0
    %1832 = vmatprep.subr.mxu0 0.0
    %1833 = vmatpush1.msra.mxu0 0.0
    %1834 = vmatprep.mubr.f32.mxu0 0.0
    %1835 = vmatmul.mubr.f32.gmra.mrb[0].mxu0 %v1768
    %v1836 = vpop.f32.mrb[0].mxu0
    %v1837 = vadd.f32 0.0, %v1836
    %v1838 = vpop.f32.mrb[0].mxu0
    %1839 = vdwg.mxu0
    %v1841 = vrot.slane %v1837, 2
    %v1843 = vadd.f32 %v1764, %v1841
    %v1844 = vld [vmem:[#allocation2 + $0x8] sm:$0x3]
    %v1845 = vrot.slane %v1753, 2
    %1846 = vrot.lane.b32.xlu0 %v1845, 32
    %v1847 = vpop.permute.xlu0 %1846
    %v1848 = vsel %vm223, %v1847, 0
    %1850 = vmatprep.subr.mxu0 0.0
    %1851 = vmatpush1.msra.mxu0 %v218
    %1852 = vmatprep.subr.mxu0 0.0
    %1853 = vmatpush1.msra.mxu0 %v219
    %1854 = vmatprep.subr.mxu0 0.0
    %1855 = vmatpush1.msra.mxu0 %v220
    %1856 = vmatprep.subr.mxu0 0.0
    %1857 = vmatpush1.msra.mxu0 %v221
    %1858 = vmatprep.subr.mxu0 0.0
    %1859 = vmatpush1.msra.mxu0 0.0
    %1860 = vmatprep.subr.mxu0 0.0
    %1861 = vmatpush1.msra.mxu0 0.0
    %1862 = vmatprep.subr.mxu0 0.0
    %1863 = vmatpush1.msra.mxu0 0.0
    %1864 = vmatprep.subr.mxu0 0.0
    %1865 = vmatpush1.msra.mxu0 0.0
    %1866 = vmatprep.subr.mxu0 0.0
    %1867 = vmatpush1.msra.mxu0 0.0
    %1868 = vmatprep.subr.mxu0 0.0
    %1869 = vmatpush1.msra.mxu0 0.0
    %1870 = vmatprep.subr.mxu0 0.0
    %1871 = vmatpush1.msra.mxu0 0.0
    %1872 = vmatprep.subr.mxu0 0.0
    %1873 = vmatpush1.msra.mxu0 0.0
    %1874 = vmatprep.subr.mxu0 0.0
    %1875 = vmatpush1.msra.mxu0 0.0
    %1876 = vmatprep.subr.mxu0 0.0
    %1877 = vmatpush1.msra.mxu0 0.0
    %1878 = vmatprep.subr.mxu0 0.0
    %1879 = vmatpush1.msra.mxu0 0.0
    %1880 = vmatprep.subr.mxu0 0.0
    %1881 = vmatpush1.msra.mxu0 0.0
    %1882 = vmatprep.subr.mxu0 0.0
    %1883 = vmatpush1.msra.mxu0 0.0
    %1884 = vmatprep.subr.mxu0 0.0
    %1885 = vmatpush1.msra.mxu0 0.0
    %1886 = vmatprep.subr.mxu0 0.0
    %1887 = vmatpush1.msra.mxu0 0.0
    %1888 = vmatprep.subr.mxu0 0.0
    %1889 = vmatpush1.msra.mxu0 0.0
    %1890 = vmatprep.subr.mxu0 0.0
    %1891 = vmatpush1.msra.mxu0 0.0
    %1892 = vmatprep.subr.mxu0 0.0
    %1893 = vmatpush1.msra.mxu0 0.0
    %1894 = vmatprep.subr.mxu0 0.0
    %1895 = vmatpush1.msra.mxu0 0.0
    %1896 = vmatprep.subr.mxu0 0.0
    %1897 = vmatpush1.msra.mxu0 0.0
    %1898 = vmatprep.subr.mxu0 0.0
    %1899 = vmatpush1.msra.mxu0 0.0
    %1900 = vmatprep.subr.mxu0 0.0
    %1901 = vmatpush1.msra.mxu0 0.0
    %1902 = vmatprep.subr.mxu0 0.0
    %1903 = vmatpush1.msra.mxu0 0.0
    %1904 = vmatprep.subr.mxu0 0.0
    %1905 = vmatpush1.msra.mxu0 0.0
    %1906 = vmatprep.subr.mxu0 0.0
    %1907 = vmatpush1.msra.mxu0 0.0
    %1908 = vmatprep.subr.mxu0 0.0
    %1909 = vmatpush1.msra.mxu0 0.0
    %1910 = vmatprep.subr.mxu0 0.0
    %1911 = vmatpush1.msra.mxu0 0.0
    %1912 = vmatprep.subr.mxu0 0.0
    %1913 = vmatpush1.msra.mxu0 0.0
    %1914 = vmatprep.mubr.f32.mxu0 0.0
    %1915 = vmatmul.mubr.f32.gmra.mrb[0].mxu0 %v1848
    %v1916 = vpop.f32.mrb[0].mxu0
    %v1917 = vadd.f32 0.0, %v1916
    %v1918 = vpop.f32.mrb[0].mxu0
    %1919 = vdwg.mxu0
    %v1920 = vadd.f32 %v1844, %v1917
    %v1921 = vxor.u32 %v1843, 2147483648
    %v1922 = vmul.f32 %v1921, 1.442695
    %v1923 = vpow.pop %v1922
    %v1924 = vadd.f32 %v1923, 1.0
    %v1925 = vrcp.pop %v1924
    %v1926 = vmul.f32 1.0, %v1925
    %v1927 = vtanh.pop %v1843
    %v1929 = vrot.slane %v1720, 6
    %v1931 = vmul.f32 %v1926, %v1929
    %1933 = vrot.lane.b32.xlu0 %v1927, 64
    %v1934 = vpop.permute.xlu0 %1933
    %v1936 = vmul.f32 %v1926, %v1934
    %1938 = vrot.lane.b32.xlu0 %v1936, 32
    %v1939 = vpop.permute.xlu0 %1938
    %v1941 = vadd.f32 %v1931, %v1939
    %v1942 = vtanh.pop %v1941
    %1944 = vrot.lane.b32.xlu0 %v1942, 64
    %v1945 = vpop.permute.xlu0 %1944
    %v1947 = vmul.f32 %v1926, %v1945
    %v1948 = vxor.u32 %v1920, 2147483648
    %v1949 = vmul.f32 %v1948, 1.442695
    %v1950 = vpow.pop %v1949
    %v1951 = vadd.f32 %v1950, 1.0
    %v1952 = vrcp.pop %v1951
    %v1953 = vmul.f32 1.0, %v1952
    %v1954 = vtanh.pop %v1920
    %v1956 = vrot.slane %v1747, 2
    %v1958 = vmul.f32 %v1953, %v1956
    %1960 = vrot.lane.b32.xlu0 %v1954, 64
    %v1961 = vpop.permute.xlu0 %1960
    %v1963 = vmul.f32 %v1953, %v1961
    %1965 = vrot.lane.b32.xlu0 %v1963, 32
    %v1966 = vpop.permute.xlu0 %1965
    %v1968 = vadd.f32 %v1958, %v1966
    %v1969 = vtanh.pop %v1968
    %1971 = vrot.lane.b32.xlu0 %v1969, 64
    %v1972 = vpop.permute.xlu0 %1971
    %v1974 = vmul.f32 %v1953, %v1972
    %1976 = vrot.lane.b32.xlu0 %v1947, 32
    %v1977 = vpop.permute.xlu0 %1976
    %1979 = vst.msk [vmem:[#allocation11 + $0x8] sm:$0xc0] %vm431, %v1977
    %1981 = vrot.lane.b32.xlu0 %v1974, 32
    %v1982 = vpop.permute.xlu0 %1981
    %1984 = vst.msk [vmem:[#allocation12] sm:$0x3] %vm425, %v1982
    // Predicated region
    $region38: #{tpu_custom_call.1} parent=1 // pred_check
      _
    $region39: #{tpu_custom_call.1} parent=1 // pred_check_branch
      %1986 = sbr.rel (0) target = $region41
    $region40: #{tpu_custom_call.1} parent=1 // pred_region
      %s1988 = ssub.s32 256, 256
      %1989 = vsyncadd [#allocation5], %s1988
      %s1990 = sshll.u32 [#allocation11], 4
      %s1991 = int_to_ptr.vmem [resolvable:$true] %s1990
      %1996 = dma.vmem_to_hbm [thread:$0]  %s1991, 256, %s5, [#allocation5], 128, 128, 8
    $region41: #{tpu_custom_call.1} parent=1 // pred_fallthru
      _
    // Predicated region
    $region42: #{tpu_custom_call.1} parent=1 // pred_check
      _
    $region43: #{tpu_custom_call.1} parent=1 // pred_check_branch
      %1998 = sbr.rel (0) target = $region45
    $region44: #{tpu_custom_call.1} parent=1 // pred_region
      %s2000 = ssub.s32 256, 256
      %2001 = vsyncadd [#allocation13], %s2000
      %s2002 = sshll.u32 [#allocation12], 4
      %s2003 = int_to_ptr.vmem [resolvable:$true] %s2002
      %2008 = dma.vmem_to_hbm [thread:$0]  %s2003, 256, %s6, [#allocation13], 128, 128, 8
    $region45: #{tpu_custom_call.1} parent=1 // pred_fallthru
      _
    // Predicated region
    $region46: #{tpu_custom_call.1} parent=1 // pred_check
      _
    $region47: #{tpu_custom_call.1} parent=1 // pred_check_branch
      %2010 = sbr.rel (0) target = $region49
    $region48: #{tpu_custom_call.1} parent=1 // pred_region
      %2011 = dma.done [#allocation5], 256
    $region49: #{tpu_custom_call.1} parent=1 // pred_fallthru
      _
    // Predicated region
    $region50: #{tpu_custom_call.1} parent=1 // pred_check
      _
    $region51: #{tpu_custom_call.1} parent=1 // pred_check_branch
      %2013 = sbr.rel (0) target = $region53
    $region52: #{tpu_custom_call.1} parent=1 // pred_region
      %2014 = dma.done [#allocation13], 256
    $region53: #{tpu_custom_call.1} parent=1 // pred_fallthru
      _
    %2015 = vsyncpa [#allocation4], 1
    %2016 = vsyncpa [#allocation7], 1
    %2017 = vsyncpa [#allocation10], 1
    %2018 = vsyncpa [#allocation5], 1
    %2019 = vsyncpa [#allocation13], 1

</llo_original>
